<compile_context>
chip_gen: v5e
topology: v5e:2x2
jax: 0.10.0
libtpu: 0.0.40
codegen_flags: <defaults>
</compile_context>

<pallas_src>
import math

import jax
import jax.numpy as jnp
import numpy as np
from jax.experimental import pallas as pl
from jax.experimental.pallas import tpu as pltpu


# -----------------------------------------------------------------------------
# Fused kernel: [3x3 conv + folded BN + ReLU] -> [1x1 conv + bias], all heads.
# -----------------------------------------------------------------------------
def _fused_ctnet_heads_kernel(x_ref, w3_ref, scale_ref, shift_ref, wf_ref,
                              bias_ref, o_ref, xpad_ref, patch_ref):
    """One grid step = one batch element x one H-tile.

    x_ref:     (1, H, W, Cin)        NHWC image of batch element n (the block
                                     is revisited across the H-tile axis, so
                                     it is DMA'd from HBM only once per n)
    w3_ref:    (9*Cin, C_stack)      bf16 stacked/flattened 3x3 weights
    scale_ref: (1, C_stack)          f32 folded BN scale (gamma/sqrt(var+eps))
    shift_ref: (1, C_stack)          f32 folded BN shift (beta - mean*scale)
    wf_ref:    (C_stack, Cout_sum)   bf16 block-diagonal 1x1 head weights
    bias_ref:  (1, Cout_sum)         f32 concatenated head biases
    o_ref:     (1, TH, W, Cout_sum)  output H-tile (all heads concatenated)
    xpad_ref:  (H+2, W+2, Cin)       f32 scratch: zero-padded copy of the image
    patch_ref: (TH, W, 9*Cin)        f32 scratch: im2col patches of this tile
    """
    t = pl.program_id(1)
    H, W, Cin = x_ref.shape[1], x_ref.shape[2], x_ref.shape[3]
    TH = o_ref.shape[1]
    Cout_sum = o_ref.shape[3]

    # Build the zero-padded image once per batch element (first H-tile).
    @pl.when(t == 0)
    def _():
        xpad_ref[...] = jnp.zeros_like(xpad_ref)
        xpad_ref[1:H + 1, 1:W + 1, :] = x_ref[0]

    # Output rows [r0, r0+TH) need padded rows [r0, r0+TH+2).
    r0 = pl.multiple_of(t * TH, TH)
    win = xpad_ref[pl.ds(r0, TH + 2), :, :]                 # (TH+2, W+2, Cin)

    # im2col: pack the 9 shifted taps along channels -> (TH, W, 9*Cin).
    for dy in range(3):
        for dx in range(3):
            k = dy * 3 + dx
            patch_ref[:, :, k * Cin:(k + 1) * Cin] = win[dy:dy + TH,
                                                         dx:dx + W, :]

    patch = patch_ref[...].reshape(TH * W, 9 * Cin).astype(jnp.bfloat16)

    # 3x3 conv for every head as a single K = 9*Cin MXU matmul (f32 accum),
    # then folded BatchNorm + ReLU in f32 on the VPU.
    inter = jnp.dot(patch, w3_ref[...], preferred_element_type=jnp.float32)
    inter = jnp.maximum(inter * scale_ref[...] + shift_ref[...], 0.0)

    # Final 1x1 convs of all heads as one block-diagonal matmul + bias.
    out = jnp.dot(inter.astype(jnp.bfloat16), wf_ref[...],
                  preferred_element_type=jnp.float32) + bias_ref[...]
    o_ref[0] = out.reshape(TH, W, Cout_sum).astype(o_ref.dtype)


# -----------------------------------------------------------------------------
# pallas_call wrapper
# -----------------------------------------------------------------------------
def _pick_tile_h(h, target=32):
    # Prefer >=2 tiles along H (pipeline depth / megacore) with TH a multiple
    # of 8 that divides H; otherwise fall back to the full height.
    for th in (target, 16, 8):
        if h % th == 0 and h // th >= 2:
            return th
    for th in (target, 16, 8):
        if h % th == 0:
            return th
    return h


def fused_ctnet_heads(x_nhwc, w3, bn_scale, bn_shift, wf, bias):
    """x_nhwc (N,H,W,Cin) f32 -> (N,H,W,Cout_sum) f32 (all heads concatenated)."""
    N, H, W, Cin = x_nhwc.shape
    K9, C_stack = w3.shape
    assert K9 == 9 * Cin
    Cout_sum = wf.shape[1]

    tile_h = _pick_tile_h(H)
    n_th = H // tile_h

    flops = 2 * N * H * W * C_stack * (9 * Cin + Cout_sum)
    bytes_accessed = (N * H * W * Cin * 4 + N * H * W * Cout_sum * 4
                      + w3.size * 2 + wf.size * 2
                      + (bn_scale.size + bn_shift.size + bias.size) * 4)

    return pl.pallas_call(
        _fused_ctnet_heads_kernel,
        out_shape=jax.ShapeDtypeStruct((N, H, W, Cout_sum), jnp.float32),
        grid_spec=pltpu.PrefetchScalarGridSpec(
            num_scalar_prefetch=0,
            grid=(N, n_th),
            in_specs=[
                pl.BlockSpec((1, H, W, Cin), lambda n, t: (n, 0, 0, 0)),
                pl.BlockSpec((K9, C_stack), lambda n, t: (0, 0)),
                pl.BlockSpec((1, C_stack), lambda n, t: (0, 0)),
                pl.BlockSpec((1, C_stack), lambda n, t: (0, 0)),
                pl.BlockSpec((C_stack, Cout_sum), lambda n, t: (0, 0)),
                pl.BlockSpec((1, Cout_sum), lambda n, t: (0, 0)),
            ],
            out_specs=pl.BlockSpec((1, tile_h, W, Cout_sum),
                                   lambda n, t: (n, t, 0, 0)),
            scratch_shapes=[
                pltpu.VMEM((H + 2, W + 2, Cin), jnp.float32),     # padded image
                pltpu.VMEM((tile_h, W, 9 * Cin), jnp.float32),    # im2col tile
            ],
        ),
        compiler_params=pltpu.CompilerParams(
            dimension_semantics=("parallel", "arbitrary"),
            vmem_limit_bytes=32 * 1024 * 1024),
        cost_estimate=pl.CostEstimate(flops=flops, transcendentals=0,
                                      bytes_accessed=bytes_accessed),
    )(x_nhwc, w3, bn_scale, bn_shift, wf, bias)


# -----------------------------------------------------------------------------
# Parameter packing (stack all heads into the fused-kernel operand layout)
# -----------------------------------------------------------------------------
def _pack_heads(params, order):
    cin = params[order[0]]['w3'].shape[1]
    n_heads = len(order)
    c_stack = n_heads * cin
    couts = [int(params[name]['w_final'].shape[0]) for name in order]
    cout_sum = sum(couts)

    # (C_stack, Cin, 3, 3) -> (3, 3, Cin, C_stack) -> (9*Cin, C_stack)
    # so row index = (dy*3 + dx)*Cin + ci matches the im2col column ordering.
    w3_all = jnp.concatenate([params[name]['w3'] for name in order], axis=0)
    w3 = jnp.transpose(w3_all, (2, 3, 1, 0)).reshape(9 * cin, c_stack)

    scale = jnp.concatenate(
        [params[name]['bn_scale'] for name in order]).reshape(1, c_stack)
    shift = jnp.concatenate(
        [params[name]['bn_shift'] for name in order]).reshape(1, c_stack)

    wf = jnp.zeros((c_stack, cout_sum), jnp.float32)
    bias = jnp.zeros((1, cout_sum), jnp.float32)
    off = 0
    for i, name in enumerate(order):
        co = couts[i]
        wf = wf.at[i * cin:(i + 1) * cin,
                   off:off + co].set(params[name]['w_final'].T)
        bias = bias.at[0, off:off + co].set(params[name]['b_final'])
        off += co

    return (w3.astype(jnp.bfloat16), scale.astype(jnp.float32),
            shift.astype(jnp.float32), wf.astype(jnp.bfloat16),
            bias.astype(jnp.float32), couts)


# -----------------------------------------------------------------------------
# CtnetHead parameters + forward
# -----------------------------------------------------------------------------
def init_ctnet_head_params(key, in_channels, heads_dict,
                           final_kernel=1, init_bias=-2.19, use_bias=False):
    """Deterministic synthetic parameter init mirroring the PyTorch __init__."""
    assert final_kernel == 1, "only final_kernel=1 is implemented"
    assert not use_bias, "intermediate 3x3 convs are bias-free (use_bias=False)"
    eps = 1e-5
    params = {}
    for cur_name, cfg in heads_dict.items():
        out_channels = cfg['out_channels']
        num_conv = cfg['num_conv']
        # TODO(synk): heads with num_conv != 2 (extra / missing 3x3+BN+ReLU
        # blocks) are not supported by the fused kernel.
        assert num_conv == 2, "fused CtnetHead kernel supports num_conv == 2"

        key, k3, kf = jax.random.split(key, 3)
        std3 = math.sqrt(2.0 / (9 * in_channels))
        w3 = jax.random.normal(
            k3, (in_channels, in_channels, 3, 3), jnp.float32) * std3

        # BatchNorm2d default buffers: gamma=1, beta=0, mean=0, var=1 -> fold.
        gamma = jnp.ones((in_channels,), jnp.float32)
        beta = jnp.zeros((in_channels,), jnp.float32)
        running_mean = jnp.zeros((in_channels,), jnp.float32)
        running_var = jnp.ones((in_channels,), jnp.float32)
        scale = gamma / jnp.sqrt(running_var + eps)
        shift = beta - running_mean * scale

        stdf = math.sqrt(2.0 / in_channels)
        w_final = jax.random.normal(
            kf, (out_channels, in_channels), jnp.float32) * stdf
        if 'hm' in cur_name:
            b_final = jnp.full((out_channels,), init_bias, jnp.float32)
        else:
            b_final = jnp.zeros((out_channels,), jnp.float32)

        params[cur_name] = dict(w3=w3, bn_scale=scale, bn_shift=shift,
                                w_final=w_final, b_final=b_final)
    return params


def ctnet_head_forward(params, x_nchw):
    """CtnetHead.forward: x (N, Cin, H, W) -> dict name -> (N, Cout, H, W)."""
    order = list(params.keys())
    w3, scale, shift, wf, bias, couts = _pack_heads(params, order)

    # Kernel works channels-last for MXU-friendly (spatial, channel) matmuls;
    # per-head output transposes only touch tiny (Cout<=2) tensors.
    x_nhwc = jnp.transpose(x_nchw.astype(jnp.float32), (0, 2, 3, 1))
    out_all = fused_ctnet_heads(x_nhwc, w3, scale, shift, wf, bias)

    ret = {}
    off = 0
    for name, co in zip(order, couts):
        ret[name] = jnp.transpose(out_all[..., off:off + co], (0, 3, 1, 2))
        off += co
    return ret


# -----------------------------------------------------------------------------
# Pure-JAX reference (for a sanity check in the demo)
# -----------------------------------------------------------------------------
def _reference_forward(params, x_nchw):
    ret = {}
    dn = ('NCHW', 'OIHW', 'NCHW')
    for name, p in params.items():
        y = jax.lax.conv_general_dilated(
            x_nchw, p['w3'], (1, 1), 'SAME', dimension_numbers=dn,
            precision=jax.lax.Precision.HIGHEST)
        y = y * p['bn_scale'][None, :, None, None] \
            + p['bn_shift'][None, :, None, None]
        y = jnp.maximum(y, 0.0)
        y = jax.lax.conv_general_dilated(
            y, p['w_final'][:, :, None, None], (1, 1), 'VALID',
            dimension_numbers=dn, precision=jax.lax.Precision.HIGHEST)
        ret[name] = y + p['b_final'][None, :, None, None]
    return ret


# -----------------------------------------------------------------------------
# Demo
# -----------------------------------------------------------------------------
if __name__ == "__main__":
    key = jax.random.PRNGKey(0)
    key, kx, kp = jax.random.split(key, 3)

    N, C, H, W = 2, 16, 16, 16
    heads_dict = {
        'hm': {'out_channels': 1, 'num_conv': 2},
        'reg': {'out_channels': 2, 'num_conv': 2},
    }

    x = jax.random.normal(kx, (N, C, H, W), jnp.float32)
    params = init_ctnet_head_params(kp, in_channels=C, heads_dict=heads_dict,
                                    final_kernel=1, init_bias=-2.19,
                                    use_bias=False)

    out = jax.jit(ctnet_head_forward)(params, x)
    out = jax.tree_util.tree_map(jax.block_until_ready, out)

    assert out['hm'].shape == (N, 1, H, W)
    assert out['reg'].shape == (N, 2, H, W)

    # Sanity check vs. pure-JAX reference (loose tolerance: bf16 MXU operands).
    ref = _reference_forward(params, x)
    for name in heads_dict:
        a = np.asarray(out[name])
        b = np.asarray(ref[name])
        rel = float(np.abs(a - b).max()) / max(float(np.abs(b).max()), 1.0)
        assert rel < 8e-2, f"{name}: relative error {rel:.4f}"

    print("KERNEL_OK")
</pallas_src>

<mosaic_0001>
module attributes {stable_mosaic.version = 11 : i64} {
  func.func @_fused_ctnet_heads_kernel(%arg0: i32, %arg1: i32, %arg2: memref<1x16x16x16xf32, #tpu.memory_space<vmem>>, %arg3: memref<144x32xbf16, #tpu.memory_space<vmem>>, %arg4: memref<1x32xf32, #tpu.memory_space<vmem>>, %arg5: memref<1x32xf32, #tpu.memory_space<vmem>>, %arg6: memref<32x3xbf16, #tpu.memory_space<vmem>>, %arg7: memref<1x3xf32, #tpu.memory_space<vmem>>, %arg8: memref<1x8x16x3xf32, #tpu.memory_space<vmem>>, %arg9: memref<18x18x16xf32, #tpu.memory_space<vmem>>, %arg10: memref<8x16x144xf32, #tpu.memory_space<vmem>>) attributes {dimension_semantics = [#tpu.dimension_semantics<parallel>, #tpu.dimension_semantics<arbitrary>], iteration_bounds = array<i64: 2, 2>, scalar_prefetch = 0 : i64, scratch_operands = 2 : i64, tpu.core_type = #tpu.core_type<tc>, window_params = [{transform_indices = @transform_0, window_bounds = array<i64: 1, 16, 16, 16>}, {pipeline_mode = #tpu.pipeline_mode<synchronous>, transform_indices = @transform_1, window_bounds = array<i64: 144, 32>}, {pipeline_mode = #tpu.pipeline_mode<synchronous>, transform_indices = @transform_2, window_bounds = array<i64: 1, 32>}, {pipeline_mode = #tpu.pipeline_mode<synchronous>, transform_indices = @transform_3, window_bounds = array<i64: 1, 32>}, {pipeline_mode = #tpu.pipeline_mode<synchronous>, transform_indices = @transform_4, window_bounds = array<i64: 32, 3>}, {pipeline_mode = #tpu.pipeline_mode<synchronous>, transform_indices = @transform_5, window_bounds = array<i64: 1, 3>}, {transform_indices = @transform_6, window_bounds = array<i64: 1, 8, 16, 3>}]} {
    %c0_i32 = arith.constant 0 : i32
    %0 = arith.cmpi eq, %arg1, %c0_i32 : i32
    %1 = arith.extui %0 : i1 to i32
    %c0_i32_0 = arith.constant 0 : i32
    %2 = arith.cmpi ne, %1, %c0_i32_0 : i32
    scf.if %2 {
      %cst_40 = arith.constant 0.000000e+00 : f32
      %48 = vector.broadcast %cst_40 : f32 to vector<18x18x16xf32>
      %c0_41 = arith.constant 0 : index
      %c0_42 = arith.constant 0 : index
      %c0_43 = arith.constant 0 : index
      %49 = vector.load %arg9[%c0_41, %c0_42, %c0_43] : memref<18x18x16xf32, #tpu.memory_space<vmem>>, vector<18x18x16xf32>
      tpu.vector_store %arg9[%c0_41, %c0_42, %c0_43], %48 {strides = array<i32>} : memref<18x18x16xf32, #tpu.memory_space<vmem>>, vector<18x18x16xf32>,
      %c0_44 = arith.constant 0 : index
      %c0_45 = arith.constant 0 : index
      %c0_46 = arith.constant 0 : index
      %c0_47 = arith.constant 0 : index
      %50 = vector.load %arg2[%c0_44, %c0_45, %c0_46, %c0_47] : memref<1x16x16x16xf32, #tpu.memory_space<vmem>>, vector<1x16x16x16xf32>
      %51 = vector.shape_cast %50 : vector<1x16x16x16xf32> to vector<16x16x16xf32>
      %c1 = arith.constant 1 : index
      %c1_48 = arith.constant 1 : index
      %c0_49 = arith.constant 0 : index
      %52 = vector.load %arg9[%c1, %c1_48, %c0_49] : memref<18x18x16xf32, #tpu.memory_space<vmem>>, vector<16x16x16xf32>
      tpu.vector_store %arg9[%c1, %c1_48, %c0_49], %51 {strides = array<i32>} : memref<18x18x16xf32, #tpu.memory_space<vmem>>, vector<16x16x16xf32>,
    } else {
    }
    %c8_i32 = arith.constant 8 : i32
    %3 = arith.muli %arg1, %c8_i32 : i32
    %4 = tpu.assume_multiple %3, 8 : i32
    %5 = arith.index_cast %4 : i32 to index
    %c0 = arith.constant 0 : index
    %c0_1 = arith.constant 0 : index
    %6 = vector.load %arg9[%5, %c0, %c0_1] : memref<18x18x16xf32, #tpu.memory_space<vmem>>, vector<10x18x16xf32>
    %7 = vector.extract_strided_slice %6 {offsets = [0, 0, 0], sizes = [8, 16, 16], strides = [1, 1, 1]} : vector<10x18x16xf32> to vector<8x16x16xf32>
    %c0_2 = arith.constant 0 : index
    %c0_3 = arith.constant 0 : index
    %c0_4 = arith.constant 0 : index
    %8 = vector.load %arg10[%c0_2, %c0_3, %c0_4] : memref<8x16x144xf32, #tpu.memory_space<vmem>>, vector<8x16x16xf32>
    tpu.vector_store %arg10[%c0_2, %c0_3, %c0_4], %7 {strides = array<i32>} : memref<8x16x144xf32, #tpu.memory_space<vmem>>, vector<8x16x16xf32>,
    %9 = vector.extract_strided_slice %6 {offsets = [0, 1, 0], sizes = [8, 16, 16], strides = [1, 1, 1]} : vector<10x18x16xf32> to vector<8x16x16xf32>
    %c0_5 = arith.constant 0 : index
    %c0_6 = arith.constant 0 : index
    %c16 = arith.constant 16 : index
    %10 = vector.load %arg10[%c0_5, %c0_6, %c16] : memref<8x16x144xf32, #tpu.memory_space<vmem>>, vector<8x16x16xf32>
    tpu.vector_store %arg10[%c0_5, %c0_6, %c16], %9 {strides = array<i32>} : memref<8x16x144xf32, #tpu.memory_space<vmem>>, vector<8x16x16xf32>,
    %11 = vector.extract_strided_slice %6 {offsets = [0, 2, 0], sizes = [8, 16, 16], strides = [1, 1, 1]} : vector<10x18x16xf32> to vector<8x16x16xf32>
    %c0_7 = arith.constant 0 : index
    %c0_8 = arith.constant 0 : index
    %c32 = arith.constant 32 : index
    %12 = vector.load %arg10[%c0_7, %c0_8, %c32] : memref<8x16x144xf32, #tpu.memory_space<vmem>>, vector<8x16x16xf32>
    tpu.vector_store %arg10[%c0_7, %c0_8, %c32], %11 {strides = array<i32>} : memref<8x16x144xf32, #tpu.memory_space<vmem>>, vector<8x16x16xf32>,
    %13 = vector.extract_strided_slice %6 {offsets = [1, 0, 0], sizes = [8, 16, 16], strides = [1, 1, 1]} : vector<10x18x16xf32> to vector<8x16x16xf32>
    %c0_9 = arith.constant 0 : index
    %c0_10 = arith.constant 0 : index
    %c48 = arith.constant 48 : index
    %14 = vector.load %arg10[%c0_9, %c0_10, %c48] : memref<8x16x144xf32, #tpu.memory_space<vmem>>, vector<8x16x16xf32>
    tpu.vector_store %arg10[%c0_9, %c0_10, %c48], %13 {strides = array<i32>} : memref<8x16x144xf32, #tpu.memory_space<vmem>>, vector<8x16x16xf32>,
    %15 = vector.extract_strided_slice %6 {offsets = [1, 1, 0], sizes = [8, 16, 16], strides = [1, 1, 1]} : vector<10x18x16xf32> to vector<8x16x16xf32>
    %c0_11 = arith.constant 0 : index
    %c0_12 = arith.constant 0 : index
    %c64 = arith.constant 64 : index
    %16 = vector.load %arg10[%c0_11, %c0_12, %c64] : memref<8x16x144xf32, #tpu.memory_space<vmem>>, vector<8x16x16xf32>
    tpu.vector_store %arg10[%c0_11, %c0_12, %c64], %15 {strides = array<i32>} : memref<8x16x144xf32, #tpu.memory_space<vmem>>, vector<8x16x16xf32>,
    %17 = vector.extract_strided_slice %6 {offsets = [1, 2, 0], sizes = [8, 16, 16], strides = [1, 1, 1]} : vector<10x18x16xf32> to vector<8x16x16xf32>
    %c0_13 = arith.constant 0 : index
    %c0_14 = arith.constant 0 : index
    %c80 = arith.constant 80 : index
    %18 = vector.load %arg10[%c0_13, %c0_14, %c80] : memref<8x16x144xf32, #tpu.memory_space<vmem>>, vector<8x16x16xf32>
    tpu.vector_store %arg10[%c0_13, %c0_14, %c80], %17 {strides = array<i32>} : memref<8x16x144xf32, #tpu.memory_space<vmem>>, vector<8x16x16xf32>,
    %19 = vector.extract_strided_slice %6 {offsets = [2, 0, 0], sizes = [8, 16, 16], strides = [1, 1, 1]} : vector<10x18x16xf32> to vector<8x16x16xf32>
    %c0_15 = arith.constant 0 : index
    %c0_16 = arith.constant 0 : index
    %c96 = arith.constant 96 : index
    %20 = vector.load %arg10[%c0_15, %c0_16, %c96] : memref<8x16x144xf32, #tpu.memory_space<vmem>>, vector<8x16x16xf32>
    tpu.vector_store %arg10[%c0_15, %c0_16, %c96], %19 {strides = array<i32>} : memref<8x16x144xf32, #tpu.memory_space<vmem>>, vector<8x16x16xf32>,
    %21 = vector.extract_strided_slice %6 {offsets = [2, 1, 0], sizes = [8, 16, 16], strides = [1, 1, 1]} : vector<10x18x16xf32> to vector<8x16x16xf32>
    %c0_17 = arith.constant 0 : index
    %c0_18 = arith.constant 0 : index
    %c112 = arith.constant 112 : index
    %22 = vector.load %arg10[%c0_17, %c0_18, %c112] : memref<8x16x144xf32, #tpu.memory_space<vmem>>, vector<8x16x16xf32>
    tpu.vector_store %arg10[%c0_17, %c0_18, %c112], %21 {strides = array<i32>} : memref<8x16x144xf32, #tpu.memory_space<vmem>>, vector<8x16x16xf32>,
    %23 = vector.extract_strided_slice %6 {offsets = [2, 2, 0], sizes = [8, 16, 16], strides = [1, 1, 1]} : vector<10x18x16xf32> to vector<8x16x16xf32>
    %c0_19 = arith.constant 0 : index
    %c0_20 = arith.constant 0 : index
    %c128 = arith.constant 128 : index
    %24 = vector.load %arg10[%c0_19, %c0_20, %c128] : memref<8x16x144xf32, #tpu.memory_space<vmem>>, vector<8x16x16xf32>
    tpu.vector_store %arg10[%c0_19, %c0_20, %c128], %23 {strides = array<i32>} : memref<8x16x144xf32, #tpu.memory_space<vmem>>, vector<8x16x16xf32>,
    %c0_21 = arith.constant 0 : index
    %c0_22 = arith.constant 0 : index
    %c0_23 = arith.constant 0 : index
    %25 = vector.load %arg10[%c0_21, %c0_22, %c0_23] : memref<8x16x144xf32, #tpu.memory_space<vmem>>, vector<8x16x144xf32>
    %26 = vector.shape_cast %25 : vector<8x16x144xf32> to vector<128x144xf32>
    %27 = arith.truncf %26 : vector<128x144xf32> to vector<128x144xbf16>
    %c0_24 = arith.constant 0 : index
    %c0_25 = arith.constant 0 : index
    %28 = vector.load %arg3[%c0_24, %c0_25] : memref<144x32xbf16, #tpu.memory_space<vmem>>, vector<144x32xbf16>
    %cst = arith.constant dense<0.000000e+00> : vector<128x32xf32>
    %29 = tpu.matmul %27, %28, %cst {dimension_numbers = #tpu.dot_dimension_numbers<[1], [0], [0], [1], [0, 0, 1, 1], [], []>} : vector<128x144xbf16>, vector<144x32xbf16>, vector<128x32xf32> -> vector<128x32xf32>
    %c0_26 = arith.constant 0 : index
    %c0_27 = arith.constant 0 : index
    %30 = vector.load %arg4[%c0_26, %c0_27] : memref<1x32xf32, #tpu.memory_space<vmem>>, vector<1x32xf32>
    %31 = vector.broadcast %30 : vector<1x32xf32> to vector<128x32xf32>
    %32 = arith.mulf %29, %31 : vector<128x32xf32>
    %c0_28 = arith.constant 0 : index
    %c0_29 = arith.constant 0 : index
    %33 = vector.load %arg5[%c0_28, %c0_29] : memref<1x32xf32, #tpu.memory_space<vmem>>, vector<1x32xf32>
    %34 = vector.broadcast %33 : vector<1x32xf32> to vector<128x32xf32>
    %35 = arith.addf %32, %34 : vector<128x32xf32>
    %cst_30 = arith.constant 0.000000e+00 : f32
    %36 = vector.broadcast %cst_30 : f32 to vector<128x32xf32>
    %37 = arith.maximumf %35, %36 : vector<128x32xf32>
    %38 = arith.truncf %37 : vector<128x32xf32> to vector<128x32xbf16>
    %c0_31 = arith.constant 0 : index
    %c0_32 = arith.constant 0 : index
    %39 = vector.load %arg6[%c0_31, %c0_32] : memref<32x3xbf16, #tpu.memory_space<vmem>>, vector<32x3xbf16>
    %cst_33 = arith.constant dense<0.000000e+00> : vector<128x3xf32>
    %40 = tpu.matmul %38, %39, %cst_33 {dimension_numbers = #tpu.dot_dimension_numbers<[1], [0], [0], [1], [0, 0, 1, 1], [], []>} : vector<128x32xbf16>, vector<32x3xbf16>, vector<128x3xf32> -> vector<128x3xf32>
    %c0_34 = arith.constant 0 : index
    %c0_35 = arith.constant 0 : index
    %41 = vector.load %arg7[%c0_34, %c0_35] : memref<1x3xf32, #tpu.memory_space<vmem>>, vector<1x3xf32>
    %42 = vector.broadcast %41 : vector<1x3xf32> to vector<128x3xf32>
    %43 = arith.addf %40, %42 : vector<128x3xf32>
    %44 = vector.shape_cast %43 : vector<128x3xf32> to vector<8x16x3xf32>
    %c0_36 = arith.constant 0 : index
    %c0_37 = arith.constant 0 : index
    %c0_38 = arith.constant 0 : index
    %c0_39 = arith.constant 0 : index
    %45 = vector.load %arg8[%c0_36, %c0_37, %c0_38, %c0_39] : memref<1x8x16x3xf32, #tpu.memory_space<vmem>>, vector<1x8x16x3xf32>
    %46 = vector.shape_cast %45 : vector<1x8x16x3xf32> to vector<8x16x3xf32>
    %47 = vector.shape_cast %44 : vector<8x16x3xf32> to vector<1x8x16x3xf32>
    tpu.vector_store %arg8[%c0_36, %c0_37, %c0_38, %c0_39], %47 {strides = array<i32>} : memref<1x8x16x3xf32, #tpu.memory_space<vmem>>, vector<1x8x16x3xf32>,
    return
  }
  func.func @transform_0(%arg0: i32, %arg1: i32) -> (i32, i32, i32, i32) {
    %c0_i32 = arith.constant 0 : i32
    %c0_i32_0 = arith.constant 0 : i32
    %c0_i32_1 = arith.constant 0 : i32
    %c0_i32_2 = arith.constant 0 : i32
    return %arg0, %c0_i32, %c0_i32_0, %c0_i32_1 : i32, i32, i32, i32
  }
  func.func @transform_1(%arg0: i32, %arg1: i32) -> (i32, i32) {
    %c0_i32 = arith.constant 0 : i32
    %c0_i32_0 = arith.constant 0 : i32
    %c0_i32_1 = arith.constant 0 : i32
    return %c0_i32, %c0_i32_0 : i32, i32
  }
  func.func @transform_2(%arg0: i32, %arg1: i32) -> (i32, i32) {
    %c0_i32 = arith.constant 0 : i32
    %c0_i32_0 = arith.constant 0 : i32
    %c0_i32_1 = arith.constant 0 : i32
    return %c0_i32, %c0_i32_0 : i32, i32
  }
  func.func @transform_3(%arg0: i32, %arg1: i32) -> (i32, i32) {
    %c0_i32 = arith.constant 0 : i32
    %c0_i32_0 = arith.constant 0 : i32
    %c0_i32_1 = arith.constant 0 : i32
    return %c0_i32, %c0_i32_0 : i32, i32
  }
  func.func @transform_4(%arg0: i32, %arg1: i32) -> (i32, i32) {
    %c0_i32 = arith.constant 0 : i32
    %c0_i32_0 = arith.constant 0 : i32
    %c0_i32_1 = arith.constant 0 : i32
    return %c0_i32, %c0_i32_0 : i32, i32
  }
  func.func @transform_5(%arg0: i32, %arg1: i32) -> (i32, i32) {
    %c0_i32 = arith.constant 0 : i32
    %c0_i32_0 = arith.constant 0 : i32
    %c0_i32_1 = arith.constant 0 : i32
    return %c0_i32, %c0_i32_0 : i32, i32
  }
  func.func @transform_6(%arg0: i32, %arg1: i32) -> (i32, i32, i32, i32) {
    %c0_i32 = arith.constant 0 : i32
    %c0_i32_0 = arith.constant 0 : i32
    %c0_i32_1 = arith.constant 0 : i32
    return %arg0, %arg1, %c0_i32, %c0_i32_0 : i32, i32, i32, i32
  }
}

</mosaic_0001>

<llo_original>
// kernel: ctnet_head_forward.1
$region0: #{ctnet_head_forward.1}
  #allocation0 [shape = 'u32[]', space=smem, size = 0x4, offset = 0x4, fixed_abs, tag = 'smem constant byte address 0x4 - core index']
  #allocation1 [shape = 'u32[72,128]{1,0:T(1,128)}', space=vmem, size = 0x9000, scoped, tag = 'internal scratch']
  #allocation2 [shape = 'f32[18,18,16]{2,1,0:T(8,128)}', space=vmem, size = 0x36000, scoped, tag = 'scratch operand']
  #allocation3 [shape = 'f32[8,16,144]{2,1,0:T(8,128)}', space=vmem, size = 0x20000, scoped, tag = 'scratch operand']
  %s0 = inlined_call_operand.vmem [shape: f32[2,16,16,16], index: 0, kind: input, shape index: {}]
  %s1 = inlined_call_operand.vmem [shape: bf16[144,32], index: 1, kind: input, shape index: {}]
  %s2 = inlined_call_operand.vmem [shape: f32[1,32], index: 2, kind: input, shape index: {}]
  %s3 = inlined_call_operand.vmem [shape: f32[1,32], index: 3, kind: input, shape index: {}]
  %s4 = inlined_call_operand.vmem [shape: bf16[32,3], index: 4, kind: input, shape index: {}]
  %s5 = inlined_call_operand.vmem [shape: f32[1,3], index: 5, kind: input, shape index: {}]
  %s6 = inlined_call_operand.vmem [shape: f32[2,16,16,3], index: 6, kind: output, shape index: {}]
  %s7 = sld [smem:[#allocation0]]
  $region61: #{ctnet_head_forward.1} parent=0
    _
  %s9 = ssub.s32 1, %s7
  %s10 = scalar_select 0, %s9, %s7
  loop: start=0, step=1, limit=6
  $region2: #{ctnet_head_forward.1} parent=0 // loop_pre_header
    _
  $region3: #{ctnet_head_forward.1} parent=0 // loop_header
    %s12 = sphi 0, %s16
    %p13 = scmp.ge.s32.totalorder %s12, 6
    %s19 = sphi 0, %s31
    %s20 = sphi 0, %s27
    %s21 = sphi 0, %s19
    %s22 = sphi 0, %s20
    %s23 = sphi 0, %s21
    %s24 = sphi 0, %s22
    %s34 = sphi 0, %s36
    %s37 = sphi 0, %s34
    %s38 = sphi 0, %s37
    %s54 = sphi 0, %s38
    %s58 = sphi 0, %s58
    %s60 = sphi 0, %s58
    %s61 = sphi 0, %s60
    %s75 = sphi 0, %s61
    %s79 = sphi 0, %s79
    %s81 = sphi 0, %s79
    %s82 = sphi 0, %s81
    %s96 = sphi 0, %s82
    %s100 = sphi 0, %s100
    %s102 = sphi 0, %s100
    %s103 = sphi 0, %s102
    %s117 = sphi 0, %s103
    %s121 = sphi 0, %s121
    %s123 = sphi 0, %s121
    %s124 = sphi 0, %s123
    %s138 = sphi 0, %s124
    %s142 = sphi 0, %s142
    %s144 = sphi 0, %s142
    %s145 = sphi 0, %s144
    %s159 = sphi 0, %s145
    %s167 = sphi 0, %s169
    %s170 = sphi 0, %s167
    %s171 = sphi 0, %s170
    %s187 = sphi 0, %s171
  $region4: #{ctnet_head_forward.1} parent=0 // loop_header_branch
    %15 = sbr.rel (%p13) target = $region8
  $region5: #{ctnet_head_forward.1} parent=0 // loop_body
    %s17 = ssub.s32 %s12, 1
    %s18 = ssub.s32 %s12, 2
    %s25 = sadd.s32 1, %s20
    %p26 = scmp.ge.s32.totalorder %s25, 2
    %s27 = scalar_select %p26, 0, %s25
    %s28 = sadd.s32 1, %s19
    %s29 = scalar_select %p26, %s28, %s19
    %p30 = scmp.ge.s32.totalorder %s29, 2
    %s31 = scalar_select %p30, 0, %s29
    %s32 = ssub.s32 %s19, %s31
    %p33 = scmp.eq.s32.totalorder %s32, 0
    %s35 = sadd.s32 %s34, 1
    %s36 = scalar_select %p33, %s34, %s35
    %p39 = pneg %p33
    %p40 = scmp.eq.s32.totalorder %s12, 3
    %p41 = por %p39, %p40
    %p42 = scmp.ne.s32.totalorder %s34, %s37
    %p43 = scmp.eq.s32.totalorder %s12, 0
    %p44 = por %p42, %p43
    %p45 = scmp.ne.s32.totalorder %s34, %s37
    %p46 = scmp.eq.s32.totalorder %s17, 3
    %p47 = por %p45, %p46
    %p48 = scmp.ne.s32.totalorder %s37, %s38
    %p49 = scmp.eq.s32.totalorder %s17, 0
    %p50 = por %p48, %p49
    %p51 = scmp.ne.s32.totalorder %s37, %s38
    %p52 = scmp.eq.s32.totalorder %s18, 3
    %p53 = por %p51, %p52
    %p55 = scmp.ne.s32.totalorder %s38, %s54
    %p56 = scmp.eq.s32.totalorder %s18, 0
    %p57 = por %p55, %p56
    %s59 = sadd.s32 %s58, 1
    %p62 = scmp.eq.s32.totalorder %s12, 3
    %p63 = scmp.ne.s32.totalorder %s58, %s60
    %p64 = scmp.eq.s32.totalorder %s12, 0
    %p65 = por %p63, %p64
    %p66 = scmp.ne.s32.totalorder %s58, %s60
    %p67 = scmp.eq.s32.totalorder %s17, 3
    %p68 = por %p66, %p67
    %p69 = scmp.ne.s32.totalorder %s60, %s61
    %p70 = scmp.eq.s32.totalorder %s17, 0
    %p71 = por %p69, %p70
    %p72 = scmp.ne.s32.totalorder %s60, %s61
    %p73 = scmp.eq.s32.totalorder %s18, 3
    %p74 = por %p72, %p73
    %p76 = scmp.ne.s32.totalorder %s61, %s75
    %p77 = scmp.eq.s32.totalorder %s18, 0
    %p78 = por %p76, %p77
    %s80 = sadd.s32 %s79, 1
    %p83 = scmp.eq.s32.totalorder %s12, 3
    %p84 = scmp.ne.s32.totalorder %s79, %s81
    %p85 = scmp.eq.s32.totalorder %s12, 0
    %p86 = por %p84, %p85
    %p87 = scmp.ne.s32.totalorder %s79, %s81
    %p88 = scmp.eq.s32.totalorder %s17, 3
    %p89 = por %p87, %p88
    %p90 = scmp.ne.s32.totalorder %s81, %s82
    %p91 = scmp.eq.s32.totalorder %s17, 0
    %p92 = por %p90, %p91
    %p93 = scmp.ne.s32.totalorder %s81, %s82
    %p94 = scmp.eq.s32.totalorder %s18, 3
    %p95 = por %p93, %p94
    %p97 = scmp.ne.s32.totalorder %s82, %s96
    %p98 = scmp.eq.s32.totalorder %s18, 0
    %p99 = por %p97, %p98
    %s101 = sadd.s32 %s100, 1
    %p104 = scmp.eq.s32.totalorder %s12, 3
    %p105 = scmp.ne.s32.totalorder %s100, %s102
    %p106 = scmp.eq.s32.totalorder %s12, 0
    %p107 = por %p105, %p106
    %p108 = scmp.ne.s32.totalorder %s100, %s102
    %p109 = scmp.eq.s32.totalorder %s17, 3
    %p110 = por %p108, %p109
    %p111 = scmp.ne.s32.totalorder %s102, %s103
    %p112 = scmp.eq.s32.totalorder %s17, 0
    %p113 = por %p111, %p112
    %p114 = scmp.ne.s32.totalorder %s102, %s103
    %p115 = scmp.eq.s32.totalorder %s18, 3
    %p116 = por %p114, %p115
    %p118 = scmp.ne.s32.totalorder %s103, %s117
    %p119 = scmp.eq.s32.totalorder %s18, 0
    %p120 = por %p118, %p119
    %s122 = sadd.s32 %s121, 1
    %p125 = scmp.eq.s32.totalorder %s12, 3
    %p126 = scmp.ne.s32.totalorder %s121, %s123
    %p127 = scmp.eq.s32.totalorder %s12, 0
    %p128 = por %p126, %p127
    %p129 = scmp.ne.s32.totalorder %s121, %s123
    %p130 = scmp.eq.s32.totalorder %s17, 3
    %p131 = por %p129, %p130
    %p132 = scmp.ne.s32.totalorder %s123, %s124
    %p133 = scmp.eq.s32.totalorder %s17, 0
    %p134 = por %p132, %p133
    %p135 = scmp.ne.s32.totalorder %s123, %s124
    %p136 = scmp.eq.s32.totalorder %s18, 3
    %p137 = por %p135, %p136
    %p139 = scmp.ne.s32.totalorder %s124, %s138
    %p140 = scmp.eq.s32.totalorder %s18, 0
    %p141 = por %p139, %p140
    %s143 = sadd.s32 %s142, 1
    %p146 = scmp.eq.s32.totalorder %s12, 3
    %p147 = scmp.ne.s32.totalorder %s142, %s144
    %p148 = scmp.eq.s32.totalorder %s12, 0
    %p149 = por %p147, %p148
    %p150 = scmp.ne.s32.totalorder %s142, %s144
    %p151 = scmp.eq.s32.totalorder %s17, 3
    %p152 = por %p150, %p151
    %p153 = scmp.ne.s32.totalorder %s144, %s145
    %p154 = scmp.eq.s32.totalorder %s17, 0
    %p155 = por %p153, %p154
    %p156 = scmp.ne.s32.totalorder %s144, %s145
    %p157 = scmp.eq.s32.totalorder %s18, 3
    %p158 = por %p156, %p157
    %p160 = scmp.ne.s32.totalorder %s145, %s159
    %p161 = scmp.eq.s32.totalorder %s18, 0
    %p162 = por %p160, %p161
    %s163 = ssub.s32 %s19, %s31
    %s164 = ssub.s32 %s20, %s27
    %s165 = sor.u32 %s163, %s164
    %p166 = scmp.eq.s32.totalorder %s165, 0
    %s168 = sadd.s32 %s167, 1
    %s169 = scalar_select %p166, %s167, %s168
    %p172 = pneg %p166
    %p173 = scmp.eq.s32.totalorder %s12, 3
    %p174 = por %p172, %p173
    %p175 = scmp.ne.s32.totalorder %s167, %s170
    %p176 = scmp.eq.s32.totalorder %s12, 0
    %p177 = por %p175, %p176
    %p178 = scmp.ne.s32.totalorder %s167, %s170
    %p179 = scmp.eq.s32.totalorder %s17, 3
    %p180 = por %p178, %p179
    %p181 = scmp.ne.s32.totalorder %s170, %s171
    %p182 = scmp.eq.s32.totalorder %s17, 0
    %p183 = por %p181, %p182
    %p184 = scmp.ne.s32.totalorder %s170, %s171
    %p185 = scmp.eq.s32.totalorder %s18, 3
    %p186 = por %p184, %p185
    %p188 = scmp.ne.s32.totalorder %s171, %s187
    %p189 = scmp.eq.s32.totalorder %s18, 0
    %p190 = por %p188, %p189
    %p191 = scmp.le.s32.totalorder 1, %s12
    %p192 = scmp.lt.s32.totalorder %s12, 5
    %p193 = pnand %p191, %p192
    %p194 = pneg %p193
    // Predicated region
    $region9: #{ctnet_head_forward.1} parent=5 // pred_check
      _
    $region10: #{ctnet_head_forward.1} parent=5 // pred_check_branch
      %196 = sbr.rel (%p193) target = $region12
    $region11: #{ctnet_head_forward.1} parent=5 // pred_region
      %s197 = ssub.s32 %s12, 1
      // Predicated region
      $region13: #{ctnet_head_forward.1} parent=11 // pred_check
        %p198 = pneg %p71
      $region14: #{ctnet_head_forward.1} parent=11 // pred_check_branch
        %200 = sbr.rel (%p198) target = $region16
      $region15: #{ctnet_head_forward.1} parent=11 // pred_region
        _
      $region16: #{ctnet_head_forward.1} parent=11 // pred_fallthru
        _
      // Predicated region
      $region17: #{ctnet_head_forward.1} parent=11 // pred_check
        %p201 = pneg %p92
      $region18: #{ctnet_head_forward.1} parent=11 // pred_check_branch
        %203 = sbr.rel (%p201) target = $region20
      $region19: #{ctnet_head_forward.1} parent=11 // pred_region
        _
      $region20: #{ctnet_head_forward.1} parent=11 // pred_fallthru
        _
      // Predicated region
      $region21: #{ctnet_head_forward.1} parent=11 // pred_check
        %p204 = pneg %p113
      $region22: #{ctnet_head_forward.1} parent=11 // pred_check_branch
        %206 = sbr.rel (%p204) target = $region24
      $region23: #{ctnet_head_forward.1} parent=11 // pred_region
        _
      $region24: #{ctnet_head_forward.1} parent=11 // pred_fallthru
        _
      // Predicated region
      $region25: #{ctnet_head_forward.1} parent=11 // pred_check
        %p207 = pneg %p134
      $region26: #{ctnet_head_forward.1} parent=11 // pred_check_branch
        %209 = sbr.rel (%p207) target = $region28
      $region27: #{ctnet_head_forward.1} parent=11 // pred_region
        _
      $region28: #{ctnet_head_forward.1} parent=11 // pred_fallthru
        _
      // Predicated region
      $region29: #{ctnet_head_forward.1} parent=11 // pred_check
        %p210 = pneg %p155
      $region30: #{ctnet_head_forward.1} parent=11 // pred_check_branch
        %212 = sbr.rel (%p210) target = $region32
      $region31: #{ctnet_head_forward.1} parent=11 // pred_region
        _
      $region32: #{ctnet_head_forward.1} parent=11 // pred_fallthru
        _
    $region12: #{ctnet_head_forward.1} parent=5 // pred_fallthru
      _
    %p213 = scmp.lt.s32.totalorder %s12, 4
    // Predicated region
    $region33: #{ctnet_head_forward.1} parent=5 // pred_check
      %p214 = pneg %p213
    $region34: #{ctnet_head_forward.1} parent=5 // pred_check_branch
      %216 = sbr.rel (%p214) target = $region36
    $region35: #{ctnet_head_forward.1} parent=5 // pred_region
      // Predicated region
      $region37: #{ctnet_head_forward.1} parent=35 // pred_check
        %p217 = pneg %p44
      $region38: #{ctnet_head_forward.1} parent=35 // pred_check_branch
        %219 = sbr.rel (%p217) target = $region40
      $region39: #{ctnet_head_forward.1} parent=35 // pred_region
        %p220 = scmp.lt.s32.totalorder %s19, 1
        %s221 = scalar_select %p220, %s19, 1
        %s222 = smul.addr %s221, 32
        %s223 = smul.addr %s222, 8
        %s224 = scalar_lea.vmem %s0, %s223
      $region40: #{ctnet_head_forward.1} parent=35 // pred_fallthru
        _
    $region36: #{ctnet_head_forward.1} parent=5 // pred_fallthru
      _
    %p225 = scmp.le.s32.totalorder 1, %s12
    %p226 = scmp.lt.s32.totalorder %s12, 5
    %p227 = pnand %p225, %p226
    %p228 = pneg %p227
    // Predicated region
    $region41: #{ctnet_head_forward.1} parent=5 // pred_check
      _
    $region42: #{ctnet_head_forward.1} parent=5 // pred_check_branch
      %230 = sbr.rel (%p227) target = $region44
    $region43: #{ctnet_head_forward.1} parent=5 // pred_region
      %s231 = ssub.s32 %s12, 1
      %p232 = scmp.lt.s32.totalorder %s21, 1
      %s233 = scalar_select %p232, %s21, 1
      %s234 = smul.addr %s233, 32
      %s235 = smul.addr %s234, 8
      %s236 = scalar_lea.vmem %s0, %s235
      %p237 = pneg %p50
      %p238 = pneg %p47
      %p239 = pneg %p71
      %p240 = pneg %p68
      %p241 = pneg %p92
      %p242 = pneg %p89
      %p243 = pneg %p113
      %p244 = pneg %p110
      %p245 = pneg %p134
      %p246 = pneg %p131
      %p247 = pneg %p155
      %p248 = pneg %p152
      %p249 = pneg %p183
      %p250 = pneg %p180
      %s251 = smul.u32 8, %s22
      %p252 = scmp.lt.s32.totalorder %s21, 1
      %s253 = scalar_select %p252, %s21, 1
      %p254 = scmp.lt.s32.totalorder %s251, 15
      %s255 = scalar_select %p254, %s251, 15
      %s256 = smul.addr %s255, 2
      %s257 = smul.addr %s253, 32
      %s258 = sadd.s32 %s256, %s257
      %s259 = smul.addr %s258, 8
      %s260 = scalar_lea.vmem %s6, %s259
      %p261 = scmp.lt.s32.totalorder %s21, 1
      %s262 = scalar_select %p261, %s21, 1
      %s263 = smul.addr %s262, 32
      %s264 = smul.addr %s263, 8
      %s265 = scalar_lea.vmem %s0, %s264
      %s266 = smul.u32 8, %s22
      %p267 = scmp.lt.s32.totalorder %s21, 1
      %s268 = scalar_select %p267, %s21, 1
      %p269 = scmp.lt.s32.totalorder %s266, 15
      %s270 = scalar_select %p269, %s266, 15
      %s271 = smul.addr %s270, 2
      %s272 = smul.addr %s268, 32
      %s273 = sadd.s32 %s271, %s272
      %s274 = smul.addr %s273, 8
      %s275 = scalar_lea.vmem %s6, %s274
      %s276 = smul.u32 8, %s22
      %p278 = scmp.eq.s32.totalorder %s22, 0
      // Predicated region
      $region45: #{ctnet_head_forward.1} parent=43 // pred_check
        %p279 = pneg %p278
      $region46: #{ctnet_head_forward.1} parent=43 // pred_check_branch
        %281 = sbr.rel (%p279) target = $region48
      $region47: #{ctnet_head_forward.1} parent=43 // pred_region
        %vm282 = vcmask 130048
        %283 = vst.msk [vmem:[#allocation2] sm:$0xff] %vm282, 0.0
        %284 = vst.msk [vmem:[#allocation2 + $0x8] sm:$0xff] %vm282, 0.0
        %vm285 = vcmask 123904
        %286 = vst.msk [vmem:[#allocation2 + $0x10] sm:$0x3] %vm285, 0.0
        %287 = vst.msk [vmem:[#allocation2 + $0x18] sm:$0xff] %vm282, 0.0
        %288 = vst.msk [vmem:[#allocation2 + $0x20] sm:$0xff] %vm282, 0.0
        %289 = vst.msk [vmem:[#allocation2 + $0x28] sm:$0x3] %vm285, 0.0
        %290 = vst.msk [vmem:[#allocation2 + $0x30] sm:$0xff] %vm282, 0.0
        %291 = vst.msk [vmem:[#allocation2 + $0x38] sm:$0xff] %vm282, 0.0
        %292 = vst.msk [vmem:[#allocation2 + $0x40] sm:$0x3] %vm285, 0.0
        %293 = vst.msk [vmem:[#allocation2 + $0x48] sm:$0xff] %vm282, 0.0
        %294 = vst.msk [vmem:[#allocation2 + $0x50] sm:$0xff] %vm282, 0.0
        %295 = vst.msk [vmem:[#allocation2 + $0x58] sm:$0x3] %vm285, 0.0
        %296 = vst.msk [vmem:[#allocation2 + $0x60] sm:$0xff] %vm282, 0.0
        %297 = vst.msk [vmem:[#allocation2 + $0x68] sm:$0xff] %vm282, 0.0
        %298 = vst.msk [vmem:[#allocation2 + $0x70] sm:$0x3] %vm285, 0.0
        %299 = vst.msk [vmem:[#allocation2 + $0x78] sm:$0xff] %vm282, 0.0
        %300 = vst.msk [vmem:[#allocation2 + $0x80] sm:$0xff] %vm282, 0.0
        %301 = vst.msk [vmem:[#allocation2 + $0x88] sm:$0x3] %vm285, 0.0
        %302 = vst.msk [vmem:[#allocation2 + $0x90] sm:$0xff] %vm282, 0.0
        %303 = vst.msk [vmem:[#allocation2 + $0x98] sm:$0xff] %vm282, 0.0
        %304 = vst.msk [vmem:[#allocation2 + $0xa0] sm:$0x3] %vm285, 0.0
        %305 = vst.msk [vmem:[#allocation2 + $0xa8] sm:$0xff] %vm282, 0.0
        %306 = vst.msk [vmem:[#allocation2 + $0xb0] sm:$0xff] %vm282, 0.0
        %307 = vst.msk [vmem:[#allocation2 + $0xb8] sm:$0x3] %vm285, 0.0
        %308 = vst.msk [vmem:[#allocation2 + $0xc0] sm:$0xff] %vm282, 0.0
        %309 = vst.msk [vmem:[#allocation2 + $0xc8] sm:$0xff] %vm282, 0.0
        %310 = vst.msk [vmem:[#allocation2 + $0xd0] sm:$0x3] %vm285, 0.0
        %311 = vst.msk [vmem:[#allocation2 + $0xd8] sm:$0xff] %vm282, 0.0
        %312 = vst.msk [vmem:[#allocation2 + $0xe0] sm:$0xff] %vm282, 0.0
        %313 = vst.msk [vmem:[#allocation2 + $0xe8] sm:$0x3] %vm285, 0.0
        %314 = vst.msk [vmem:[#allocation2 + $0xf0] sm:$0xff] %vm282, 0.0
        %315 = vst.msk [vmem:[#allocation2 + $0xf8] sm:$0xff] %vm282, 0.0
        %316 = vst.msk [vmem:[#allocation2 + $0x100] sm:$0x3] %vm285, 0.0
        %317 = vst.msk [vmem:[#allocation2 + $0x108] sm:$0xff] %vm282, 0.0
        %318 = vst.msk [vmem:[#allocation2 + $0x110] sm:$0xff] %vm282, 0.0
        %319 = vst.msk [vmem:[#allocation2 + $0x118] sm:$0x3] %vm285, 0.0
        %320 = vst.msk [vmem:[#allocation2 + $0x120] sm:$0xff] %vm282, 0.0
        %321 = vst.msk [vmem:[#allocation2 + $0x128] sm:$0xff] %vm282, 0.0
        %322 = vst.msk [vmem:[#allocation2 + $0x130] sm:$0x3] %vm285, 0.0
        %323 = vst.msk [vmem:[#allocation2 + $0x138] sm:$0xff] %vm282, 0.0
        %324 = vst.msk [vmem:[#allocation2 + $0x140] sm:$0xff] %vm282, 0.0
        %325 = vst.msk [vmem:[#allocation2 + $0x148] sm:$0x3] %vm285, 0.0
        %326 = vst.msk [vmem:[#allocation2 + $0x150] sm:$0xff] %vm282, 0.0
        %327 = vst.msk [vmem:[#allocation2 + $0x158] sm:$0xff] %vm282, 0.0
        %328 = vst.msk [vmem:[#allocation2 + $0x160] sm:$0x3] %vm285, 0.0
        %329 = vst.msk [vmem:[#allocation2 + $0x168] sm:$0xff] %vm282, 0.0
        %330 = vst.msk [vmem:[#allocation2 + $0x170] sm:$0xff] %vm282, 0.0
        %331 = vst.msk [vmem:[#allocation2 + $0x178] sm:$0x3] %vm285, 0.0
        %332 = vst.msk [vmem:[#allocation2 + $0x180] sm:$0xff] %vm282, 0.0
        %333 = vst.msk [vmem:[#allocation2 + $0x188] sm:$0xff] %vm282, 0.0
        %334 = vst.msk [vmem:[#allocation2 + $0x190] sm:$0x3] %vm285, 0.0
        %335 = vst.msk [vmem:[#allocation2 + $0x198] sm:$0xff] %vm282, 0.0
        %336 = vst.msk [vmem:[#allocation2 + $0x1a0] sm:$0xff] %vm282, 0.0
        %337 = vst.msk [vmem:[#allocation2 + $0x1a8] sm:$0x3] %vm285, 0.0
        %v338 = vld [vmem:[%s265] sm:$0xff]
        %v339 = vld [vmem:[%s265 + $0x8] sm:$0xff]
        %v340 = vld [vmem:[%s265 + $0x10] sm:$0xff]
        %v341 = vld [vmem:[%s265 + $0x18] sm:$0xff]
        %v342 = vld [vmem:[%s265 + $0x20] sm:$0xff]
        %v343 = vld [vmem:[%s265 + $0x28] sm:$0xff]
        %v344 = vld [vmem:[%s265 + $0x30] sm:$0xff]
        %v345 = vld [vmem:[%s265 + $0x38] sm:$0xff]
        %v346 = vld [vmem:[%s265 + $0x40] sm:$0xff]
        %v347 = vld [vmem:[%s265 + $0x48] sm:$0xff]
        %v348 = vld [vmem:[%s265 + $0x50] sm:$0xff]
        %v349 = vld [vmem:[%s265 + $0x58] sm:$0xff]
        %v350 = vld [vmem:[%s265 + $0x60] sm:$0xff]
        %v351 = vld [vmem:[%s265 + $0x68] sm:$0xff]
        %v352 = vld [vmem:[%s265 + $0x70] sm:$0xff]
        %v353 = vld [vmem:[%s265 + $0x78] sm:$0xff]
        %v354 = vld [vmem:[%s265 + $0x80] sm:$0xff]
        %v355 = vld [vmem:[%s265 + $0x88] sm:$0xff]
        %v356 = vld [vmem:[%s265 + $0x90] sm:$0xff]
        %v357 = vld [vmem:[%s265 + $0x98] sm:$0xff]
        %v358 = vld [vmem:[%s265 + $0xa0] sm:$0xff]
        %v359 = vld [vmem:[%s265 + $0xa8] sm:$0xff]
        %v360 = vld [vmem:[%s265 + $0xb0] sm:$0xff]
        %v361 = vld [vmem:[%s265 + $0xb8] sm:$0xff]
        %v362 = vld [vmem:[%s265 + $0xc0] sm:$0xff]
        %v363 = vld [vmem:[%s265 + $0xc8] sm:$0xff]
        %v364 = vld [vmem:[%s265 + $0xd0] sm:$0xff]
        %v365 = vld [vmem:[%s265 + $0xd8] sm:$0xff]
        %v366 = vld [vmem:[%s265 + $0xe0] sm:$0xff]
        %v367 = vld [vmem:[%s265 + $0xe8] sm:$0xff]
        %v368 = vld [vmem:[%s265 + $0xf0] sm:$0xff]
        %v369 = vld [vmem:[%s265 + $0xf8] sm:$0xff]
        %s370 = scalar_lea.vmem [#allocation2], 24
        %371 = vst.msk [vmem:[%s370 + $0x1] sm:$0xff] %vm282, %v338
        %372 = vst.msk [vmem:[%s370 + $0x9] sm:$0xff] %vm282, %v339
        %373 = vst.msk [vmem:[%s370 + $0x19] sm:$0xff] %vm282, %v340
        %374 = vst.msk [vmem:[%s370 + $0x21] sm:$0xff] %vm282, %v341
        %375 = vst.msk [vmem:[%s370 + $0x31] sm:$0xff] %vm282, %v342
        %376 = vst.msk [vmem:[%s370 + $0x39] sm:$0xff] %vm282, %v343
        %377 = vst.msk [vmem:[%s370 + $0x49] sm:$0xff] %vm282, %v344
        %378 = vst.msk [vmem:[%s370 + $0x51] sm:$0xff] %vm282, %v345
        %379 = vst.msk [vmem:[%s370 + $0x61] sm:$0xff] %vm282, %v346
        %380 = vst.msk [vmem:[%s370 + $0x69] sm:$0xff] %vm282, %v347
        %381 = vst.msk [vmem:[%s370 + $0x79] sm:$0xff] %vm282, %v348
        %382 = vst.msk [vmem:[%s370 + $0x81] sm:$0xff] %vm282, %v349
        %383 = vst.msk [vmem:[%s370 + $0x91] sm:$0xff] %vm282, %v350
        %384 = vst.msk [vmem:[%s370 + $0x99] sm:$0xff] %vm282, %v351
        %385 = vst.msk [vmem:[%s370 + $0xa9] sm:$0xff] %vm282, %v352
        %386 = vst.msk [vmem:[%s370 + $0xb1] sm:$0xff] %vm282, %v353
        %387 = vst.msk [vmem:[%s370 + $0xc1] sm:$0xff] %vm282, %v354
        %388 = vst.msk [vmem:[%s370 + $0xc9] sm:$0xff] %vm282, %v355
        %389 = vst.msk [vmem:[%s370 + $0xd9] sm:$0xff] %vm282, %v356
        %390 = vst.msk [vmem:[%s370 + $0xe1] sm:$0xff] %vm282, %v357
        %391 = vst.msk [vmem:[%s370 + $0xf1] sm:$0xff] %vm282, %v358
        %392 = vst.msk [vmem:[%s370 + $0xf9] sm:$0xff] %vm282, %v359
        %393 = vst.msk [vmem:[%s370 + $0x109] sm:$0xff] %vm282, %v360
        %394 = vst.msk [vmem:[%s370 + $0x111] sm:$0xff] %vm282, %v361
        %395 = vst.msk [vmem:[%s370 + $0x121] sm:$0xff] %vm282, %v362
        %396 = vst.msk [vmem:[%s370 + $0x129] sm:$0xff] %vm282, %v363
        %397 = vst.msk [vmem:[%s370 + $0x139] sm:$0xff] %vm282, %v364
        %398 = vst.msk [vmem:[%s370 + $0x141] sm:$0xff] %vm282, %v365
        %399 = vst.msk [vmem:[%s370 + $0x151] sm:$0xff] %vm282, %v366
        %400 = vst.msk [vmem:[%s370 + $0x159] sm:$0xff] %vm282, %v367
        %401 = vst.msk [vmem:[%s370 + $0x169] sm:$0xff] %vm282, %v368
        %402 = vst.msk [vmem:[%s370 + $0x171] sm:$0xff] %vm282, %v369
      $region48: #{ctnet_head_forward.1} parent=43 // pred_fallthru
        _
      %s403 = smul.u32 %s22, 8
      %s404 = smul.u32 %s403, 24
      %s405 = scalar_lea.vmem [#allocation2], %s404
      %v406 = vld [vmem:[%s405] sm:$0xff]
      %v407 = vld [vmem:[%s405 + $0x8] sm:$0xff]
      %v408 = vld [vmem:[%s405 + $0x10] sm:$0x3]
      %v409 = vld [vmem:[%s405 + $0x18] sm:$0xff]
      %v410 = vld [vmem:[%s405 + $0x20] sm:$0xff]
      %v411 = vld [vmem:[%s405 + $0x28] sm:$0x3]
      %v412 = vld [vmem:[%s405 + $0x30] sm:$0xff]
      %v413 = vld [vmem:[%s405 + $0x38] sm:$0xff]
      %v414 = vld [vmem:[%s405 + $0x40] sm:$0x3]
      %v415 = vld [vmem:[%s405 + $0x48] sm:$0xff]
      %v416 = vld [vmem:[%s405 + $0x50] sm:$0xff]
      %v417 = vld [vmem:[%s405 + $0x58] sm:$0x3]
      %v418 = vld [vmem:[%s405 + $0x60] sm:$0xff]
      %v419 = vld [vmem:[%s405 + $0x68] sm:$0xff]
      %v420 = vld [vmem:[%s405 + $0x70] sm:$0x3]
      %v421 = vld [vmem:[%s405 + $0x78] sm:$0xff]
      %v422 = vld [vmem:[%s405 + $0x80] sm:$0xff]
      %v423 = vld [vmem:[%s405 + $0x88] sm:$0x3]
      %v424 = vld [vmem:[%s405 + $0x90] sm:$0xff]
      %v425 = vld [vmem:[%s405 + $0x98] sm:$0xff]
      %v426 = vld [vmem:[%s405 + $0xa0] sm:$0x3]
      %v427 = vld [vmem:[%s405 + $0xa8] sm:$0xff]
      %v428 = vld [vmem:[%s405 + $0xb0] sm:$0xff]
      %v429 = vld [vmem:[%s405 + $0xb8] sm:$0x3]
      %v430 = vld [vmem:[%s405 + $0xc0] sm:$0xff]
      %v431 = vld [vmem:[%s405 + $0xc8] sm:$0xff]
      %v432 = vld [vmem:[%s405 + $0xd0] sm:$0x3]
      %v433 = vld [vmem:[%s405 + $0xd8] sm:$0xff]
      %v434 = vld [vmem:[%s405 + $0xe0] sm:$0xff]
      %v435 = vld [vmem:[%s405 + $0xe8] sm:$0x3]
      %vm436 = vcmask 130048
      %437 = vst.msk [vmem:[#allocation3] sm:$0xff] %vm436, %v406
      %438 = vst.msk [vmem:[#allocation3 + $0x10] sm:$0xff] %vm436, %v407
      %439 = vst.msk [vmem:[#allocation3 + $0x20] sm:$0xff] %vm436, %v409
      %440 = vst.msk [vmem:[#allocation3 + $0x30] sm:$0xff] %vm436, %v410
      %441 = vst.msk [vmem:[#allocation3 + $0x40] sm:$0xff] %vm436, %v412
      %442 = vst.msk [vmem:[#allocation3 + $0x50] sm:$0xff] %vm436, %v413
      %443 = vst.msk [vmem:[#allocation3 + $0x60] sm:$0xff] %vm436, %v415
      %444 = vst.msk [vmem:[#allocation3 + $0x70] sm:$0xff] %vm436, %v416
      %445 = vst.msk [vmem:[#allocation3 + $0x80] sm:$0xff] %vm436, %v418
      %446 = vst.msk [vmem:[#allocation3 + $0x90] sm:$0xff] %vm436, %v419
      %447 = vst.msk [vmem:[#allocation3 + $0xa0] sm:$0xff] %vm436, %v421
      %448 = vst.msk [vmem:[#allocation3 + $0xb0] sm:$0xff] %vm436, %v422
      %449 = vst.msk [vmem:[#allocation3 + $0xc0] sm:$0xff] %vm436, %v424
      %450 = vst.msk [vmem:[#allocation3 + $0xd0] sm:$0xff] %vm436, %v425
      %451 = vst.msk [vmem:[#allocation3 + $0xe0] sm:$0xff] %vm436, %v427
      %452 = vst.msk [vmem:[#allocation3 + $0xf0] sm:$0xff] %vm436, %v428
      %vm477 = vcmask 1046528
      %v478 = vrot.slane %v406, 1
      %v479 = vrot.slane %v407, 1
      %v480 = vsel %vm477, %v478, %v479
      %v481 = vrot.slane %v408, 1
      %v482 = vsel %vm477, %v479, %v481
      %v483 = vrot.slane %v409, 1
      %v484 = vrot.slane %v410, 1
      %v485 = vsel %vm477, %v483, %v484
      %v486 = vrot.slane %v411, 1
      %v487 = vsel %vm477, %v484, %v486
      %v488 = vrot.slane %v412, 1
      %v489 = vrot.slane %v413, 1
      %v490 = vsel %vm477, %v488, %v489
      %v491 = vrot.slane %v414, 1
      %v492 = vsel %vm477, %v489, %v491
      %v493 = vrot.slane %v415, 1
      %v494 = vrot.slane %v416, 1
      %v495 = vsel %vm477, %v493, %v494
      %v496 = vrot.slane %v417, 1
      %v497 = vsel %vm477, %v494, %v496
      %v498 = vrot.slane %v418, 1
      %v499 = vrot.slane %v419, 1
      %v500 = vsel %vm477, %v498, %v499
      %v501 = vrot.slane %v420, 1
      %v502 = vsel %vm477, %v499, %v501
      %v503 = vrot.slane %v421, 1
      %v504 = vrot.slane %v422, 1
      %v505 = vsel %vm477, %v503, %v504
      %v506 = vrot.slane %v423, 1
      %v507 = vsel %vm477, %v504, %v506
      %v508 = vrot.slane %v424, 1
      %v509 = vrot.slane %v425, 1
      %v510 = vsel %vm477, %v508, %v509
      %v511 = vrot.slane %v426, 1
      %v512 = vsel %vm477, %v509, %v511
      %v513 = vrot.slane %v427, 1
      %v514 = vrot.slane %v428, 1
      %v515 = vsel %vm477, %v513, %v514
      %v516 = vrot.slane %v429, 1
      %v517 = vsel %vm477, %v514, %v516
      %518 = vrot.lane.b32.xlu0 %v480, 16
      %v519 = vpop.permute.xlu0 %518
      %520 = vrot.lane.b32.xlu0 %v482, 16
      %v521 = vpop.permute.xlu0 %520
      %522 = vrot.lane.b32.xlu0 %v485, 16
      %v523 = vpop.permute.xlu0 %522
      %524 = vrot.lane.b32.xlu0 %v487, 16
      %v525 = vpop.permute.xlu0 %524
      %526 = vrot.lane.b32.xlu0 %v490, 16
      %v527 = vpop.permute.xlu0 %526
      %528 = vrot.lane.b32.xlu0 %v492, 16
      %v529 = vpop.permute.xlu0 %528
      %530 = vrot.lane.b32.xlu0 %v495, 16
      %v531 = vpop.permute.xlu0 %530
      %532 = vrot.lane.b32.xlu0 %v497, 16
      %v533 = vpop.permute.xlu0 %532
      %534 = vrot.lane.b32.xlu0 %v500, 16
      %v535 = vpop.permute.xlu0 %534
      %536 = vrot.lane.b32.xlu0 %v502, 16
      %v537 = vpop.permute.xlu0 %536
      %538 = vrot.lane.b32.xlu0 %v505, 16
      %v539 = vpop.permute.xlu0 %538
      %540 = vrot.lane.b32.xlu0 %v507, 16
      %v541 = vpop.permute.xlu0 %540
      %542 = vrot.lane.b32.xlu0 %v510, 16
      %v543 = vpop.permute.xlu0 %542
      %544 = vrot.lane.b32.xlu0 %v512, 16
      %v545 = vpop.permute.xlu0 %544
      %546 = vrot.lane.b32.xlu0 %v515, 16
      %v547 = vpop.permute.xlu0 %546
      %548 = vrot.lane.b32.xlu0 %v517, 16
      %v549 = vpop.permute.xlu0 %548
      %vm566 = vcmask 261248
      %567 = vst.msk [vmem:[#allocation3] sm:$0xff] %vm566, %v519
      %568 = vst.msk [vmem:[#allocation3 + $0x10] sm:$0xff] %vm566, %v521
      %569 = vst.msk [vmem:[#allocation3 + $0x20] sm:$0xff] %vm566, %v523
      %570 = vst.msk [vmem:[#allocation3 + $0x30] sm:$0xff] %vm566, %v525
      %571 = vst.msk [vmem:[#allocation3 + $0x40] sm:$0xff] %vm566, %v527
      %572 = vst.msk [vmem:[#allocation3 + $0x50] sm:$0xff] %vm566, %v529
      %573 = vst.msk [vmem:[#allocation3 + $0x60] sm:$0xff] %vm566, %v531
      %574 = vst.msk [vmem:[#allocation3 + $0x70] sm:$0xff] %vm566, %v533
      %575 = vst.msk [vmem:[#allocation3 + $0x80] sm:$0xff] %vm566, %v535
      %576 = vst.msk [vmem:[#allocation3 + $0x90] sm:$0xff] %vm566, %v537
      %577 = vst.msk [vmem:[#allocation3 + $0xa0] sm:$0xff] %vm566, %v539
      %578 = vst.msk [vmem:[#allocation3 + $0xb0] sm:$0xff] %vm566, %v541
      %579 = vst.msk [vmem:[#allocation3 + $0xc0] sm:$0xff] %vm566, %v543
      %580 = vst.msk [vmem:[#allocation3 + $0xd0] sm:$0xff] %vm566, %v545
      %581 = vst.msk [vmem:[#allocation3 + $0xe0] sm:$0xff] %vm566, %v547
      %582 = vst.msk [vmem:[#allocation3 + $0xf0] sm:$0xff] %vm566, %v549
      %vm583 = vcmask 1045504
      %v584 = vrot.slane %v406, 2
      %v585 = vrot.slane %v407, 2
      %v586 = vsel %vm583, %v584, %v585
      %v587 = vrot.slane %v408, 2
      %v588 = vsel %vm583, %v585, %v587
      %v589 = vrot.slane %v409, 2
      %v590 = vrot.slane %v410, 2
      %v591 = vsel %vm583, %v589, %v590
      %v592 = vrot.slane %v411, 2
      %v593 = vsel %vm583, %v590, %v592
      %v594 = vrot.slane %v412, 2
      %v595 = vrot.slane %v413, 2
      %v596 = vsel %vm583, %v594, %v595
      %v597 = vrot.slane %v414, 2
      %v598 = vsel %vm583, %v595, %v597
      %v599 = vrot.slane %v415, 2
      %v600 = vrot.slane %v416, 2
      %v601 = vsel %vm583, %v599, %v600
      %v602 = vrot.slane %v417, 2
      %v603 = vsel %vm583, %v600, %v602
      %v604 = vrot.slane %v418, 2
      %v605 = vrot.slane %v419, 2
      %v606 = vsel %vm583, %v604, %v605
      %v607 = vrot.slane %v420, 2
      %v608 = vsel %vm583, %v605, %v607
      %v609 = vrot.slane %v421, 2
      %v610 = vrot.slane %v422, 2
      %v611 = vsel %vm583, %v609, %v610
      %v612 = vrot.slane %v423, 2
      %v613 = vsel %vm583, %v610, %v612
      %v614 = vrot.slane %v424, 2
      %v615 = vrot.slane %v425, 2
      %v616 = vsel %vm583, %v614, %v615
      %v617 = vrot.slane %v426, 2
      %v618 = vsel %vm583, %v615, %v617
      %v619 = vrot.slane %v427, 2
      %v620 = vrot.slane %v428, 2
      %v621 = vsel %vm583, %v619, %v620
      %v622 = vrot.slane %v429, 2
      %v623 = vsel %vm583, %v620, %v622
      %624 = vrot.lane.b32.xlu0 %v586, 32
      %v625 = vpop.permute.xlu0 %624
      %626 = vrot.lane.b32.xlu0 %v588, 32
      %v627 = vpop.permute.xlu0 %626
      %628 = vrot.lane.b32.xlu0 %v591, 32
      %v629 = vpop.permute.xlu0 %628
      %630 = vrot.lane.b32.xlu0 %v593, 32
      %v631 = vpop.permute.xlu0 %630
      %632 = vrot.lane.b32.xlu0 %v596, 32
      %v633 = vpop.permute.xlu0 %632
      %634 = vrot.lane.b32.xlu0 %v598, 32
      %v635 = vpop.permute.xlu0 %634
      %636 = vrot.lane.b32.xlu0 %v601, 32
      %v637 = vpop.permute.xlu0 %636
      %638 = vrot.lane.b32.xlu0 %v603, 32
      %v639 = vpop.permute.xlu0 %638
      %640 = vrot.lane.b32.xlu0 %v606, 32
      %v641 = vpop.permute.xlu0 %640
      %642 = vrot.lane.b32.xlu0 %v608, 32
      %v643 = vpop.permute.xlu0 %642
      %644 = vrot.lane.b32.xlu0 %v611, 32
      %v645 = vpop.permute.xlu0 %644
      %646 = vrot.lane.b32.xlu0 %v613, 32
      %v647 = vpop.permute.xlu0 %646
      %648 = vrot.lane.b32.xlu0 %v616, 32
      %v649 = vpop.permute.xlu0 %648
      %650 = vrot.lane.b32.xlu0 %v618, 32
      %v651 = vpop.permute.xlu0 %650
      %652 = vrot.lane.b32.xlu0 %v621, 32
      %v653 = vpop.permute.xlu0 %652
      %654 = vrot.lane.b32.xlu0 %v623, 32
      %v655 = vpop.permute.xlu0 %654
      %vm672 = vcmask 392448
      %673 = vst.msk [vmem:[#allocation3] sm:$0xff] %vm672, %v625
      %674 = vst.msk [vmem:[#allocation3 + $0x10] sm:$0xff] %vm672, %v627
      %675 = vst.msk [vmem:[#allocation3 + $0x20] sm:$0xff] %vm672, %v629
      %676 = vst.msk [vmem:[#allocation3 + $0x30] sm:$0xff] %vm672, %v631
      %677 = vst.msk [vmem:[#allocation3 + $0x40] sm:$0xff] %vm672, %v633
      %678 = vst.msk [vmem:[#allocation3 + $0x50] sm:$0xff] %vm672, %v635
      %679 = vst.msk [vmem:[#allocation3 + $0x60] sm:$0xff] %vm672, %v637
      %680 = vst.msk [vmem:[#allocation3 + $0x70] sm:$0xff] %vm672, %v639
      %681 = vst.msk [vmem:[#allocation3 + $0x80] sm:$0xff] %vm672, %v641
      %682 = vst.msk [vmem:[#allocation3 + $0x90] sm:$0xff] %vm672, %v643
      %683 = vst.msk [vmem:[#allocation3 + $0xa0] sm:$0xff] %vm672, %v645
      %684 = vst.msk [vmem:[#allocation3 + $0xb0] sm:$0xff] %vm672, %v647
      %685 = vst.msk [vmem:[#allocation3 + $0xc0] sm:$0xff] %vm672, %v649
      %686 = vst.msk [vmem:[#allocation3 + $0xd0] sm:$0xff] %vm672, %v651
      %687 = vst.msk [vmem:[#allocation3 + $0xe0] sm:$0xff] %vm672, %v653
      %688 = vst.msk [vmem:[#allocation3 + $0xf0] sm:$0xff] %vm672, %v655
      %691 = vrot.lane.b32.xlu0 %v409, 48
      %v692 = vpop.permute.xlu0 %691
      %693 = vrot.lane.b32.xlu0 %v410, 48
      %v694 = vpop.permute.xlu0 %693
      %695 = vrot.lane.b32.xlu0 %v412, 48
      %v696 = vpop.permute.xlu0 %695
      %697 = vrot.lane.b32.xlu0 %v413, 48
      %v698 = vpop.permute.xlu0 %697
      %699 = vrot.lane.b32.xlu0 %v415, 48
      %v700 = vpop.permute.xlu0 %699
      %701 = vrot.lane.b32.xlu0 %v416, 48
      %v702 = vpop.permute.xlu0 %701
      %703 = vrot.lane.b32.xlu0 %v418, 48
      %v704 = vpop.permute.xlu0 %703
      %705 = vrot.lane.b32.xlu0 %v419, 48
      %v706 = vpop.permute.xlu0 %705
      %707 = vrot.lane.b32.xlu0 %v421, 48
      %v708 = vpop.permute.xlu0 %707
      %709 = vrot.lane.b32.xlu0 %v422, 48
      %v710 = vpop.permute.xlu0 %709
      %711 = vrot.lane.b32.xlu0 %v424, 48
      %v712 = vpop.permute.xlu0 %711
      %713 = vrot.lane.b32.xlu0 %v425, 48
      %v714 = vpop.permute.xlu0 %713
      %715 = vrot.lane.b32.xlu0 %v427, 48
      %v716 = vpop.permute.xlu0 %715
      %717 = vrot.lane.b32.xlu0 %v428, 48
      %v718 = vpop.permute.xlu0 %717
      %719 = vrot.lane.b32.xlu0 %v430, 48
      %v720 = vpop.permute.xlu0 %719
      %721 = vrot.lane.b32.xlu0 %v431, 48
      %v722 = vpop.permute.xlu0 %721
      %vm739 = vcmask 523648
      %740 = vst.msk [vmem:[#allocation3] sm:$0xff] %vm739, %v692
      %741 = vst.msk [vmem:[#allocation3 + $0x10] sm:$0xff] %vm739, %v694
      %742 = vst.msk [vmem:[#allocation3 + $0x20] sm:$0xff] %vm739, %v696
      %743 = vst.msk [vmem:[#allocation3 + $0x30] sm:$0xff] %vm739, %v698
      %744 = vst.msk [vmem:[#allocation3 + $0x40] sm:$0xff] %vm739, %v700
      %745 = vst.msk [vmem:[#allocation3 + $0x50] sm:$0xff] %vm739, %v702
      %746 = vst.msk [vmem:[#allocation3 + $0x60] sm:$0xff] %vm739, %v704
      %747 = vst.msk [vmem:[#allocation3 + $0x70] sm:$0xff] %vm739, %v706
      %748 = vst.msk [vmem:[#allocation3 + $0x80] sm:$0xff] %vm739, %v708
      %749 = vst.msk [vmem:[#allocation3 + $0x90] sm:$0xff] %vm739, %v710
      %750 = vst.msk [vmem:[#allocation3 + $0xa0] sm:$0xff] %vm739, %v712
      %751 = vst.msk [vmem:[#allocation3 + $0xb0] sm:$0xff] %vm739, %v714
      %752 = vst.msk [vmem:[#allocation3 + $0xc0] sm:$0xff] %vm739, %v716
      %753 = vst.msk [vmem:[#allocation3 + $0xd0] sm:$0xff] %vm739, %v718
      %754 = vst.msk [vmem:[#allocation3 + $0xe0] sm:$0xff] %vm739, %v720
      %755 = vst.msk [vmem:[#allocation3 + $0xf0] sm:$0xff] %vm739, %v722
      %v757 = vrot.slane %v430, 1
      %v758 = vrot.slane %v431, 1
      %v759 = vsel %vm477, %v757, %v758
      %v760 = vrot.slane %v432, 1
      %v761 = vsel %vm477, %v758, %v760
      %762 = vrot.lane.b32.xlu0 %v485, 64
      %v763 = vpop.permute.xlu0 %762
      %764 = vrot.lane.b32.xlu0 %v487, 64
      %v765 = vpop.permute.xlu0 %764
      %766 = vrot.lane.b32.xlu0 %v490, 64
      %v767 = vpop.permute.xlu0 %766
      %768 = vrot.lane.b32.xlu0 %v492, 64
      %v769 = vpop.permute.xlu0 %768
      %770 = vrot.lane.b32.xlu0 %v495, 64
      %v771 = vpop.permute.xlu0 %770
      %772 = vrot.lane.b32.xlu0 %v497, 64
      %v773 = vpop.permute.xlu0 %772
      %774 = vrot.lane.b32.xlu0 %v500, 64
      %v775 = vpop.permute.xlu0 %774
      %776 = vrot.lane.b32.xlu0 %v502, 64
      %v777 = vpop.permute.xlu0 %776
      %778 = vrot.lane.b32.xlu0 %v505, 64
      %v779 = vpop.permute.xlu0 %778
      %780 = vrot.lane.b32.xlu0 %v507, 64
      %v781 = vpop.permute.xlu0 %780
      %782 = vrot.lane.b32.xlu0 %v510, 64
      %v783 = vpop.permute.xlu0 %782
      %784 = vrot.lane.b32.xlu0 %v512, 64
      %v785 = vpop.permute.xlu0 %784
      %786 = vrot.lane.b32.xlu0 %v515, 64
      %v787 = vpop.permute.xlu0 %786
      %788 = vrot.lane.b32.xlu0 %v517, 64
      %v789 = vpop.permute.xlu0 %788
      %790 = vrot.lane.b32.xlu0 %v759, 64
      %v791 = vpop.permute.xlu0 %790
      %792 = vrot.lane.b32.xlu0 %v761, 64
      %v793 = vpop.permute.xlu0 %792
      %vm810 = vcmask 654848
      %811 = vst.msk [vmem:[#allocation3] sm:$0xff] %vm810, %v763
      %812 = vst.msk [vmem:[#allocation3 + $0x10] sm:$0xff] %vm810, %v765
      %813 = vst.msk [vmem:[#allocation3 + $0x20] sm:$0xff] %vm810, %v767
      %814 = vst.msk [vmem:[#allocation3 + $0x30] sm:$0xff] %vm810, %v769
      %815 = vst.msk [vmem:[#allocation3 + $0x40] sm:$0xff] %vm810, %v771
      %816 = vst.msk [vmem:[#allocation3 + $0x50] sm:$0xff] %vm810, %v773
      %817 = vst.msk [vmem:[#allocation3 + $0x60] sm:$0xff] %vm810, %v775
      %818 = vst.msk [vmem:[#allocation3 + $0x70] sm:$0xff] %vm810, %v777
      %819 = vst.msk [vmem:[#allocation3 + $0x80] sm:$0xff] %vm810, %v779
      %820 = vst.msk [vmem:[#allocation3 + $0x90] sm:$0xff] %vm810, %v781
      %821 = vst.msk [vmem:[#allocation3 + $0xa0] sm:$0xff] %vm810, %v783
      %822 = vst.msk [vmem:[#allocation3 + $0xb0] sm:$0xff] %vm810, %v785
      %823 = vst.msk [vmem:[#allocation3 + $0xc0] sm:$0xff] %vm810, %v787
      %824 = vst.msk [vmem:[#allocation3 + $0xd0] sm:$0xff] %vm810, %v789
      %825 = vst.msk [vmem:[#allocation3 + $0xe0] sm:$0xff] %vm810, %v791
      %826 = vst.msk [vmem:[#allocation3 + $0xf0] sm:$0xff] %vm810, %v793
      %v827 = vrot.slane %v430, 2
      %v828 = vrot.slane %v431, 2
      %v829 = vsel %vm583, %v827, %v828
      %v830 = vrot.slane %v432, 2
      %v831 = vsel %vm583, %v828, %v830
      %832 = vrot.lane.b32.xlu0 %v591, 80
      %v833 = vpop.permute.xlu0 %832
      %834 = vrot.lane.b32.xlu0 %v593, 80
      %v835 = vpop.permute.xlu0 %834
      %836 = vrot.lane.b32.xlu0 %v596, 80
      %v837 = vpop.permute.xlu0 %836
      %838 = vrot.lane.b32.xlu0 %v598, 80
      %v839 = vpop.permute.xlu0 %838
      %840 = vrot.lane.b32.xlu0 %v601, 80
      %v841 = vpop.permute.xlu0 %840
      %842 = vrot.lane.b32.xlu0 %v603, 80
      %v843 = vpop.permute.xlu0 %842
      %844 = vrot.lane.b32.xlu0 %v606, 80
      %v845 = vpop.permute.xlu0 %844
      %846 = vrot.lane.b32.xlu0 %v608, 80
      %v847 = vpop.permute.xlu0 %846
      %848 = vrot.lane.b32.xlu0 %v611, 80
      %v849 = vpop.permute.xlu0 %848
      %850 = vrot.lane.b32.xlu0 %v613, 80
      %v851 = vpop.permute.xlu0 %850
      %852 = vrot.lane.b32.xlu0 %v616, 80
      %v853 = vpop.permute.xlu0 %852
      %854 = vrot.lane.b32.xlu0 %v618, 80
      %v855 = vpop.permute.xlu0 %854
      %856 = vrot.lane.b32.xlu0 %v621, 80
      %v857 = vpop.permute.xlu0 %856
      %858 = vrot.lane.b32.xlu0 %v623, 80
      %v859 = vpop.permute.xlu0 %858
      %860 = vrot.lane.b32.xlu0 %v829, 80
      %v861 = vpop.permute.xlu0 %860
      %862 = vrot.lane.b32.xlu0 %v831, 80
      %v863 = vpop.permute.xlu0 %862
      %vm880 = vcmask 786048
      %881 = vst.msk [vmem:[#allocation3] sm:$0xff] %vm880, %v833
      %882 = vst.msk [vmem:[#allocation3 + $0x10] sm:$0xff] %vm880, %v835
      %883 = vst.msk [vmem:[#allocation3 + $0x20] sm:$0xff] %vm880, %v837
      %884 = vst.msk [vmem:[#allocation3 + $0x30] sm:$0xff] %vm880, %v839
      %885 = vst.msk [vmem:[#allocation3 + $0x40] sm:$0xff] %vm880, %v841
      %886 = vst.msk [vmem:[#allocation3 + $0x50] sm:$0xff] %vm880, %v843
      %887 = vst.msk [vmem:[#allocation3 + $0x60] sm:$0xff] %vm880, %v845
      %888 = vst.msk [vmem:[#allocation3 + $0x70] sm:$0xff] %vm880, %v847
      %889 = vst.msk [vmem:[#allocation3 + $0x80] sm:$0xff] %vm880, %v849
      %890 = vst.msk [vmem:[#allocation3 + $0x90] sm:$0xff] %vm880, %v851
      %891 = vst.msk [vmem:[#allocation3 + $0xa0] sm:$0xff] %vm880, %v853
      %892 = vst.msk [vmem:[#allocation3 + $0xb0] sm:$0xff] %vm880, %v855
      %893 = vst.msk [vmem:[#allocation3 + $0xc0] sm:$0xff] %vm880, %v857
      %894 = vst.msk [vmem:[#allocation3 + $0xd0] sm:$0xff] %vm880, %v859
      %895 = vst.msk [vmem:[#allocation3 + $0xe0] sm:$0xff] %vm880, %v861
      %896 = vst.msk [vmem:[#allocation3 + $0xf0] sm:$0xff] %vm880, %v863
      %899 = vrot.lane.b32.xlu0 %v412, 96
      %v900 = vpop.permute.xlu0 %899
      %901 = vrot.lane.b32.xlu0 %v413, 96
      %v902 = vpop.permute.xlu0 %901
      %903 = vrot.lane.b32.xlu0 %v415, 96
      %v904 = vpop.permute.xlu0 %903
      %905 = vrot.lane.b32.xlu0 %v416, 96
      %v906 = vpop.permute.xlu0 %905
      %907 = vrot.lane.b32.xlu0 %v418, 96
      %v908 = vpop.permute.xlu0 %907
      %909 = vrot.lane.b32.xlu0 %v419, 96
      %v910 = vpop.permute.xlu0 %909
      %911 = vrot.lane.b32.xlu0 %v421, 96
      %v912 = vpop.permute.xlu0 %911
      %913 = vrot.lane.b32.xlu0 %v422, 96
      %v914 = vpop.permute.xlu0 %913
      %915 = vrot.lane.b32.xlu0 %v424, 96
      %v916 = vpop.permute.xlu0 %915
      %917 = vrot.lane.b32.xlu0 %v425, 96
      %v918 = vpop.permute.xlu0 %917
      %919 = vrot.lane.b32.xlu0 %v427, 96
      %v920 = vpop.permute.xlu0 %919
      %921 = vrot.lane.b32.xlu0 %v428, 96
      %v922 = vpop.permute.xlu0 %921
      %923 = vrot.lane.b32.xlu0 %v430, 96
      %v924 = vpop.permute.xlu0 %923
      %925 = vrot.lane.b32.xlu0 %v431, 96
      %v926 = vpop.permute.xlu0 %925
      %927 = vrot.lane.b32.xlu0 %v433, 96
      %v928 = vpop.permute.xlu0 %927
      %929 = vrot.lane.b32.xlu0 %v434, 96
      %v930 = vpop.permute.xlu0 %929
      %vm947 = vcmask 917248
      %948 = vst.msk [vmem:[#allocation3] sm:$0xff] %vm947, %v900
      %949 = vst.msk [vmem:[#allocation3 + $0x10] sm:$0xff] %vm947, %v902
      %950 = vst.msk [vmem:[#allocation3 + $0x20] sm:$0xff] %vm947, %v904
      %951 = vst.msk [vmem:[#allocation3 + $0x30] sm:$0xff] %vm947, %v906
      %952 = vst.msk [vmem:[#allocation3 + $0x40] sm:$0xff] %vm947, %v908
      %953 = vst.msk [vmem:[#allocation3 + $0x50] sm:$0xff] %vm947, %v910
      %954 = vst.msk [vmem:[#allocation3 + $0x60] sm:$0xff] %vm947, %v912
      %955 = vst.msk [vmem:[#allocation3 + $0x70] sm:$0xff] %vm947, %v914
      %956 = vst.msk [vmem:[#allocation3 + $0x80] sm:$0xff] %vm947, %v916
      %957 = vst.msk [vmem:[#allocation3 + $0x90] sm:$0xff] %vm947, %v918
      %958 = vst.msk [vmem:[#allocation3 + $0xa0] sm:$0xff] %vm947, %v920
      %959 = vst.msk [vmem:[#allocation3 + $0xb0] sm:$0xff] %vm947, %v922
      %960 = vst.msk [vmem:[#allocation3 + $0xc0] sm:$0xff] %vm947, %v924
      %961 = vst.msk [vmem:[#allocation3 + $0xd0] sm:$0xff] %vm947, %v926
      %962 = vst.msk [vmem:[#allocation3 + $0xe0] sm:$0xff] %vm947, %v928
      %963 = vst.msk [vmem:[#allocation3 + $0xf0] sm:$0xff] %vm947, %v930
      %v965 = vrot.slane %v433, 1
      %v966 = vrot.slane %v434, 1
      %v967 = vsel %vm477, %v965, %v966
      %v968 = vrot.slane %v435, 1
      %v969 = vsel %vm477, %v966, %v968
      %970 = vrot.lane.b32.xlu0 %v490, 112
      %v971 = vpop.permute.xlu0 %970
      %972 = vrot.lane.b32.xlu0 %v492, 112
      %v973 = vpop.permute.xlu0 %972
      %974 = vrot.lane.b32.xlu0 %v495, 112
      %v975 = vpop.permute.xlu0 %974
      %976 = vrot.lane.b32.xlu0 %v497, 112
      %v977 = vpop.permute.xlu0 %976
      %978 = vrot.lane.b32.xlu0 %v500, 112
      %v979 = vpop.permute.xlu0 %978
      %980 = vrot.lane.b32.xlu0 %v502, 112
      %v981 = vpop.permute.xlu0 %980
      %982 = vrot.lane.b32.xlu0 %v505, 112
      %v983 = vpop.permute.xlu0 %982
      %984 = vrot.lane.b32.xlu0 %v507, 112
      %v985 = vpop.permute.xlu0 %984
      %986 = vrot.lane.b32.xlu0 %v510, 112
      %v987 = vpop.permute.xlu0 %986
      %988 = vrot.lane.b32.xlu0 %v512, 112
      %v989 = vpop.permute.xlu0 %988
      %990 = vrot.lane.b32.xlu0 %v515, 112
      %v991 = vpop.permute.xlu0 %990
      %992 = vrot.lane.b32.xlu0 %v517, 112
      %v993 = vpop.permute.xlu0 %992
      %994 = vrot.lane.b32.xlu0 %v759, 112
      %v995 = vpop.permute.xlu0 %994
      %996 = vrot.lane.b32.xlu0 %v761, 112
      %v997 = vpop.permute.xlu0 %996
      %998 = vrot.lane.b32.xlu0 %v967, 112
      %v999 = vpop.permute.xlu0 %998
      %1000 = vrot.lane.b32.xlu0 %v969, 112
      %v1001 = vpop.permute.xlu0 %1000
      %vm1018 = vcmask 1048448
      %1019 = vst.msk [vmem:[#allocation3] sm:$0xff] %vm1018, %v971
      %1020 = vst.msk [vmem:[#allocation3 + $0x10] sm:$0xff] %vm1018, %v973
      %1021 = vst.msk [vmem:[#allocation3 + $0x20] sm:$0xff] %vm1018, %v975
      %1022 = vst.msk [vmem:[#allocation3 + $0x30] sm:$0xff] %vm1018, %v977
      %1023 = vst.msk [vmem:[#allocation3 + $0x40] sm:$0xff] %vm1018, %v979
      %1024 = vst.msk [vmem:[#allocation3 + $0x50] sm:$0xff] %vm1018, %v981
      %1025 = vst.msk [vmem:[#allocation3 + $0x60] sm:$0xff] %vm1018, %v983
      %1026 = vst.msk [vmem:[#allocation3 + $0x70] sm:$0xff] %vm1018, %v985
      %1027 = vst.msk [vmem:[#allocation3 + $0x80] sm:$0xff] %vm1018, %v987
      %1028 = vst.msk [vmem:[#allocation3 + $0x90] sm:$0xff] %vm1018, %v989
      %1029 = vst.msk [vmem:[#allocation3 + $0xa0] sm:$0xff] %vm1018, %v991
      %1030 = vst.msk [vmem:[#allocation3 + $0xb0] sm:$0xff] %vm1018, %v993
      %1031 = vst.msk [vmem:[#allocation3 + $0xc0] sm:$0xff] %vm1018, %v995
      %1032 = vst.msk [vmem:[#allocation3 + $0xd0] sm:$0xff] %vm1018, %v997
      %1033 = vst.msk [vmem:[#allocation3 + $0xe0] sm:$0xff] %vm1018, %v999
      %1034 = vst.msk [vmem:[#allocation3 + $0xf0] sm:$0xff] %vm1018, %v1001
      %v1035 = vrot.slane %v433, 2
      %v1036 = vrot.slane %v434, 2
      %v1037 = vsel %vm583, %v1035, %v1036
      %v1038 = vrot.slane %v435, 2
      %v1039 = vsel %vm583, %v1036, %v1038
      %1056 = vst.msk [vmem:[#allocation3 + $0x8] sm:$0xff] %vm436, %v596
      %1057 = vst.msk [vmem:[#allocation3 + $0x18] sm:$0xff] %vm436, %v598
      %1058 = vst.msk [vmem:[#allocation3 + $0x28] sm:$0xff] %vm436, %v601
      %1059 = vst.msk [vmem:[#allocation3 + $0x38] sm:$0xff] %vm436, %v603
      %1060 = vst.msk [vmem:[#allocation3 + $0x48] sm:$0xff] %vm436, %v606
      %1061 = vst.msk [vmem:[#allocation3 + $0x58] sm:$0xff] %vm436, %v608
      %1062 = vst.msk [vmem:[#allocation3 + $0x68] sm:$0xff] %vm436, %v611
      %1063 = vst.msk [vmem:[#allocation3 + $0x78] sm:$0xff] %vm436, %v613
      %1064 = vst.msk [vmem:[#allocation3 + $0x88] sm:$0xff] %vm436, %v616
      %1065 = vst.msk [vmem:[#allocation3 + $0x98] sm:$0xff] %vm436, %v618
      %1066 = vst.msk [vmem:[#allocation3 + $0xa8] sm:$0xff] %vm436, %v621
      %1067 = vst.msk [vmem:[#allocation3 + $0xb8] sm:$0xff] %vm436, %v623
      %1068 = vst.msk [vmem:[#allocation3 + $0xc8] sm:$0xff] %vm436, %v829
      %1069 = vst.msk [vmem:[#allocation3 + $0xd8] sm:$0xff] %vm436, %v831
      %1070 = vst.msk [vmem:[#allocation3 + $0xe8] sm:$0xff] %vm436, %v1037
      %1071 = vst.msk [vmem:[#allocation3 + $0xf8] sm:$0xff] %vm436, %v1039
      %v1072 = vld [vmem:[#allocation3] sm:$0xff]
      %v1073 = vld [vmem:[#allocation3 + $0x8] sm:$0xff]
      %v1074 = vld [vmem:[#allocation3 + $0x10] sm:$0xff]
      %v1075 = vld [vmem:[#allocation3 + $0x18] sm:$0xff]
      %v1076 = vld [vmem:[#allocation3 + $0x20] sm:$0xff]
      %v1077 = vld [vmem:[#allocation3 + $0x28] sm:$0xff]
      %v1078 = vld [vmem:[#allocation3 + $0x30] sm:$0xff]
      %v1079 = vld [vmem:[#allocation3 + $0x38] sm:$0xff]
      %v1080 = vld [vmem:[#allocation3 + $0x40] sm:$0xff]
      %v1081 = vld [vmem:[#allocation3 + $0x48] sm:$0xff]
      %v1082 = vld [vmem:[#allocation3 + $0x50] sm:$0xff]
      %v1083 = vld [vmem:[#allocation3 + $0x58] sm:$0xff]
      %v1084 = vld [vmem:[#allocation3 + $0x60] sm:$0xff]
      %v1085 = vld [vmem:[#allocation3 + $0x68] sm:$0xff]
      %v1086 = vld [vmem:[#allocation3 + $0x70] sm:$0xff]
      %v1087 = vld [vmem:[#allocation3 + $0x78] sm:$0xff]
      %v1088 = vld [vmem:[#allocation3 + $0x80] sm:$0xff]
      %v1089 = vld [vmem:[#allocation3 + $0x88] sm:$0xff]
      %v1090 = vld [vmem:[#allocation3 + $0x90] sm:$0xff]
      %v1091 = vld [vmem:[#allocation3 + $0x98] sm:$0xff]
      %v1092 = vld [vmem:[#allocation3 + $0xa0] sm:$0xff]
      %v1093 = vld [vmem:[#allocation3 + $0xa8] sm:$0xff]
      %v1094 = vld [vmem:[#allocation3 + $0xb0] sm:$0xff]
      %v1095 = vld [vmem:[#allocation3 + $0xb8] sm:$0xff]
      %v1096 = vld [vmem:[#allocation3 + $0xc0] sm:$0xff]
      %v1097 = vld [vmem:[#allocation3 + $0xc8] sm:$0xff]
      %v1098 = vld [vmem:[#allocation3 + $0xd0] sm:$0xff]
      %v1099 = vld [vmem:[#allocation3 + $0xd8] sm:$0xff]
      %v1100 = vld [vmem:[#allocation3 + $0xe0] sm:$0xff]
      %v1101 = vld [vmem:[#allocation3 + $0xe8] sm:$0xff]
      %v1102 = vld [vmem:[#allocation3 + $0xf0] sm:$0xff]
      %v1103 = vld [vmem:[#allocation3 + $0xf8] sm:$0xff]
      %v1104 = vpack.c.bf16 %v1074, %v1072
      %v1105 = vpack.c.bf16 %v1075, %v1073
      %v1106 = vpack.c.bf16 %v1078, %v1076
      %v1107 = vpack.c.bf16 %v1079, %v1077
      %v1108 = vpack.c.bf16 %v1082, %v1080
      %v1109 = vpack.c.bf16 %v1083, %v1081
      %v1110 = vpack.c.bf16 %v1086, %v1084
      %v1111 = vpack.c.bf16 %v1087, %v1085
      %v1112 = vpack.c.bf16 %v1090, %v1088
      %v1113 = vpack.c.bf16 %v1091, %v1089
      %v1114 = vpack.c.bf16 %v1094, %v1092
      %v1115 = vpack.c.bf16 %v1095, %v1093
      %v1116 = vpack.c.bf16 %v1098, %v1096
      %v1117 = vpack.c.bf16 %v1099, %v1097
      %v1118 = vpack.c.bf16 %v1102, %v1100
      %v1119 = vpack.c.bf16 %v1103, %v1101
      %v1120 = vld [vmem:[%s1] sm:$0xf]
      %v1121 = vld [vmem:[%s1 + $0x4] sm:$0xf]
      %v1122 = vld [vmem:[%s1 + $0x8] sm:$0xf]
      %v1123 = vld [vmem:[%s1 + $0xc] sm:$0xf]
      %v1124 = vld [vmem:[%s1 + $0x10] sm:$0xf]
      %v1125 = vld [vmem:[%s1 + $0x14] sm:$0xf]
      %v1126 = vld [vmem:[%s1 + $0x18] sm:$0xf]
      %v1127 = vld [vmem:[%s1 + $0x1c] sm:$0xf]
      %v1128 = vld [vmem:[%s1 + $0x20] sm:$0xf]
      %v1129 = vld [vmem:[%s1 + $0x24] sm:$0xf]
      %v1130 = vld [vmem:[%s1 + $0x28] sm:$0xf]
      %v1131 = vld [vmem:[%s1 + $0x2c] sm:$0xf]
      %v1132 = vld [vmem:[%s1 + $0x30] sm:$0xf]
      %v1133 = vld [vmem:[%s1 + $0x34] sm:$0xf]
      %v1134 = vld [vmem:[%s1 + $0x38] sm:$0xf]
      %v1135 = vld [vmem:[%s1 + $0x3c] sm:$0xf]
      %v1136 = vld [vmem:[%s1 + $0x40] sm:$0xf]
      %v1137 = vld [vmem:[%s1 + $0x44] sm:$0xf]
      %v1156 = vunpack.c.l.b16 %v1120
      %v1157 = vunpack.c.l.b16 %v1121
      %v1158 = vunpack.c.l.b16 %v1122
      %v1159 = vunpack.c.l.b16 %v1123
      %v1160 = vunpack.c.l.b16 %v1124
      %v1161 = vunpack.c.l.b16 %v1125
      %v1162 = vunpack.c.l.b16 %v1126
      %v1163 = vunpack.c.l.b16 %v1127
      %v1164 = vunpack.c.l.b16 %v1128
      %v1165 = vunpack.c.l.b16 %v1129
      %v1166 = vunpack.c.l.b16 %v1130
      %v1167 = vunpack.c.l.b16 %v1131
      %v1168 = vunpack.c.l.b16 %v1132
      %v1169 = vunpack.c.l.b16 %v1133
      %v1170 = vunpack.c.l.b16 %v1134
      %v1171 = vunpack.c.l.b16 %v1135
      %v1172 = vunpack.c.l.b16 %v1136
      %v1173 = vunpack.c.l.b16 %v1137
      %v1174 = vpack.c.b16 %v1157, %v1156
      %v1175 = vpack.c.b16 %v1159, %v1158
      %v1176 = vpack.c.b16 %v1161, %v1160
      %v1177 = vpack.c.b16 %v1163, %v1162
      %v1178 = vpack.c.b16 %v1165, %v1164
      %v1179 = vpack.c.b16 %v1167, %v1166
      %v1180 = vpack.c.b16 %v1169, %v1168
      %v1181 = vpack.c.b16 %v1171, %v1170
      %v1182 = vpack.c.b16 %v1173, %v1172
      %v1193 = vsel %vm436, %v1105, 0
      %v1196 = vsel %vm436, %v1107, 0
      %v1199 = vsel %vm436, %v1109, 0
      %v1202 = vsel %vm436, %v1111, 0
      %v1205 = vsel %vm436, %v1113, 0
      %v1208 = vsel %vm436, %v1115, 0
      %v1211 = vsel %vm436, %v1117, 0
      %v1214 = vsel %vm436, %v1119, 0
      %1216 = vmatpush.bf16.msra.mxu0 %v1181
      %1217 = vmatpush.bf16.msra.mxu0 %v1180
      %1218 = vmatpush.bf16.msra.mxu0 %v1179
      %1219 = vmatpush.bf16.msra.mxu0 %v1178
      %1220 = vmatpush.bf16.msra.mxu0 %v1177
      %1221 = vmatpush.bf16.msra.mxu0 %v1176
      %1222 = vmatpush.bf16.msra.mxu0 %v1175
      %1223 = vmatpush.bf16.msra.mxu0 %v1174
      %1224 = vmatmul.bf16.gmra.mxu0 %v1104
      %v1225 = vpop.f32.mrf.mxu0
      %v1226 = vadd.f32 0.0, %v1225
      %v1227 = vpop.f32.mrf.mxu0
      %v1228 = vadd.f32 0.0, %v1227
      %1229 = vmatmul.bf16.gmra.mxu0 %v1106
      %v1230 = vpop.f32.mrf.mxu0
      %v1231 = vadd.f32 0.0, %v1230
      %v1232 = vpop.f32.mrf.mxu0
      %v1233 = vadd.f32 0.0, %v1232
      %1234 = vmatmul.bf16.gmra.mxu0 %v1108
      %v1235 = vpop.f32.mrf.mxu0
      %v1236 = vadd.f32 0.0, %v1235
      %v1237 = vpop.f32.mrf.mxu0
      %v1238 = vadd.f32 0.0, %v1237
      %1239 = vmatmul.bf16.gmra.mxu0 %v1110
      %v1240 = vpop.f32.mrf.mxu0
      %v1241 = vadd.f32 0.0, %v1240
      %v1242 = vpop.f32.mrf.mxu0
      %v1243 = vadd.f32 0.0, %v1242
      %1244 = vmatmul.bf16.gmra.mxu0 %v1112
      %v1245 = vpop.f32.mrf.mxu0
      %v1246 = vadd.f32 0.0, %v1245
      %v1247 = vpop.f32.mrf.mxu0
      %v1248 = vadd.f32 0.0, %v1247
      %1249 = vmatmul.bf16.gmra.mxu0 %v1114
      %v1250 = vpop.f32.mrf.mxu0
      %v1251 = vadd.f32 0.0, %v1250
      %v1252 = vpop.f32.mrf.mxu0
      %v1253 = vadd.f32 0.0, %v1252
      %1254 = vmatmul.bf16.gmra.mxu0 %v1116
      %v1255 = vpop.f32.mrf.mxu0
      %v1256 = vadd.f32 0.0, %v1255
      %v1257 = vpop.f32.mrf.mxu0
      %v1258 = vadd.f32 0.0, %v1257
      %1259 = vmatmul.bf16.gmra.mxu0 %v1118
      %v1260 = vpop.f32.mrf.mxu0
      %v1261 = vadd.f32 0.0, %v1260
      %v1262 = vpop.f32.mrf.mxu0
      %v1263 = vadd.f32 0.0, %v1262
      %1264 = vdwg.mxu0
      %1265 = vmatpush.bf16.msra.mxu0 0
      %1266 = vmatpush.bf16.msra.mxu0 0
      %1267 = vmatpush.bf16.msra.mxu0 0
      %1268 = vmatpush.bf16.msra.mxu0 0
      %1269 = vmatpush.bf16.msra.mxu0 0
      %1270 = vmatpush.bf16.msra.mxu0 0
      %1271 = vmatpush.bf16.msra.mxu0 0
      %1272 = vmatpush.bf16.msra.mxu0 %v1182
      %1273 = vmatmul.bf16.gmra.mxu0 %v1193
      %v1274 = vpop.f32.mrf.mxu0
      %v1275 = vadd.f32 %v1226, %v1274
      %v1276 = vpop.f32.mrf.mxu0
      %v1277 = vadd.f32 %v1228, %v1276
      %1278 = vmatmul.bf16.gmra.mxu0 %v1196
      %v1279 = vpop.f32.mrf.mxu0
      %v1280 = vadd.f32 %v1231, %v1279
      %v1281 = vpop.f32.mrf.mxu0
      %v1282 = vadd.f32 %v1233, %v1281
      %1283 = vmatmul.bf16.gmra.mxu0 %v1199
      %v1284 = vpop.f32.mrf.mxu0
      %v1285 = vadd.f32 %v1236, %v1284
      %v1286 = vpop.f32.mrf.mxu0
      %v1287 = vadd.f32 %v1238, %v1286
      %1288 = vmatmul.bf16.gmra.mxu0 %v1202
      %v1289 = vpop.f32.mrf.mxu0
      %v1290 = vadd.f32 %v1241, %v1289
      %v1291 = vpop.f32.mrf.mxu0
      %v1292 = vadd.f32 %v1243, %v1291
      %1293 = vmatmul.bf16.gmra.mxu0 %v1205
      %v1294 = vpop.f32.mrf.mxu0
      %v1295 = vadd.f32 %v1246, %v1294
      %v1296 = vpop.f32.mrf.mxu0
      %v1297 = vadd.f32 %v1248, %v1296
      %1298 = vmatmul.bf16.gmra.mxu0 %v1208
      %v1299 = vpop.f32.mrf.mxu0
      %v1300 = vadd.f32 %v1251, %v1299
      %v1301 = vpop.f32.mrf.mxu0
      %v1302 = vadd.f32 %v1253, %v1301
      %1303 = vmatmul.bf16.gmra.mxu0 %v1211
      %v1304 = vpop.f32.mrf.mxu0
      %v1305 = vadd.f32 %v1256, %v1304
      %v1306 = vpop.f32.mrf.mxu0
      %v1307 = vadd.f32 %v1258, %v1306
      %1308 = vmatmul.bf16.gmra.mxu0 %v1214
      %v1309 = vpop.f32.mrf.mxu0
      %v1310 = vadd.f32 %v1261, %v1309
      %v1311 = vpop.f32.mrf.mxu0
      %v1312 = vadd.f32 %v1263, %v1311
      %1313 = vdwg.mxu0
      %v1314 = vld [vmem:[%s2] sm:$0x1]
      %v1316 = vperm.slane %v1314, 0
      %v1318 = vmul.f32 %v1275, %v1316
      %v1319 = vmul.f32 %v1277, %v1316
      %v1320 = vmul.f32 %v1280, %v1316
      %v1321 = vmul.f32 %v1282, %v1316
      %v1322 = vmul.f32 %v1285, %v1316
      %v1323 = vmul.f32 %v1287, %v1316
      %v1324 = vmul.f32 %v1290, %v1316
      %v1325 = vmul.f32 %v1292, %v1316
      %v1326 = vmul.f32 %v1295, %v1316
      %v1327 = vmul.f32 %v1297, %v1316
      %v1328 = vmul.f32 %v1300, %v1316
      %v1329 = vmul.f32 %v1302, %v1316
      %v1330 = vmul.f32 %v1305, %v1316
      %v1331 = vmul.f32 %v1307, %v1316
      %v1332 = vmul.f32 %v1310, %v1316
      %v1333 = vmul.f32 %v1312, %v1316
      %v1334 = vld [vmem:[%s3] sm:$0x1]
      %v1336 = vperm.slane %v1334, 0
      %v1338 = vadd.f32 %v1318, %v1336
      %v1339 = vadd.f32 %v1319, %v1336
      %v1340 = vadd.f32 %v1320, %v1336
      %v1341 = vadd.f32 %v1321, %v1336
      %v1342 = vadd.f32 %v1322, %v1336
      %v1343 = vadd.f32 %v1323, %v1336
      %v1344 = vadd.f32 %v1324, %v1336
      %v1345 = vadd.f32 %v1325, %v1336
      %v1346 = vadd.f32 %v1326, %v1336
      %v1347 = vadd.f32 %v1327, %v1336
      %v1348 = vadd.f32 %v1328, %v1336
      %v1349 = vadd.f32 %v1329, %v1336
      %v1350 = vadd.f32 %v1330, %v1336
      %v1351 = vadd.f32 %v1331, %v1336
      %v1352 = vadd.f32 %v1332, %v1336
      %v1353 = vadd.f32 %v1333, %v1336
      %v1354 = vmax.f32 %v1338, 0.0
      %v1355 = vmax.f32 %v1339, 0.0
      %v1356 = vmax.f32 %v1340, 0.0
      %v1357 = vmax.f32 %v1341, 0.0
      %v1358 = vmax.f32 %v1342, 0.0
      %v1359 = vmax.f32 %v1343, 0.0
      %v1360 = vmax.f32 %v1344, 0.0
      %v1361 = vmax.f32 %v1345, 0.0
      %v1362 = vmax.f32 %v1346, 0.0
      %v1363 = vmax.f32 %v1347, 0.0
      %v1364 = vmax.f32 %v1348, 0.0
      %v1365 = vmax.f32 %v1349, 0.0
      %v1366 = vmax.f32 %v1350, 0.0
      %v1367 = vmax.f32 %v1351, 0.0
      %v1368 = vmax.f32 %v1352, 0.0
      %v1369 = vmax.f32 %v1353, 0.0
      %v1370 = vpack.c.bf16 %v1355, %v1354
      %v1371 = vpack.c.bf16 %v1357, %v1356
      %v1372 = vpack.c.bf16 %v1359, %v1358
      %v1373 = vpack.c.bf16 %v1361, %v1360
      %v1374 = vpack.c.bf16 %v1363, %v1362
      %v1375 = vpack.c.bf16 %v1365, %v1364
      %v1376 = vpack.c.bf16 %v1367, %v1366
      %v1377 = vpack.c.bf16 %v1369, %v1368
      %v1378 = vld [vmem:[%s4] sm:$0xf]
      %v1379 = vld [vmem:[%s4 + $0x4] sm:$0xf]
      %v1380 = vld [vmem:[%s4 + $0x8] sm:$0xf]
      %v1381 = vld [vmem:[%s4 + $0xc] sm:$0xf]
      %v1382 = vld [vmem:[%s5] sm:$0x1]
      %v1384 = vperm.slane %v1382, 0
      %v1390 = vunpack.c.l.b16 %v1378
      %v1391 = vunpack.c.l.b16 %v1379
      %v1392 = vunpack.c.l.b16 %v1380
      %v1393 = vunpack.c.l.b16 %v1381
      %v1394 = vpack.c.b16 %v1391, %v1390
      %v1395 = vpack.c.b16 %v1393, %v1392
      %vm1398 = vcmask 261120
      %v1400 = vsel %vm1398, %v1370, 0
      %v1403 = vsel %vm1398, %v1371, 0
      %v1406 = vsel %vm1398, %v1372, 0
      %v1409 = vsel %vm1398, %v1373, 0
      %v1412 = vsel %vm1398, %v1374, 0
      %v1415 = vsel %vm1398, %v1375, 0
      %v1418 = vsel %vm1398, %v1376, 0
      %v1421 = vsel %vm1398, %v1377, 0
      %1423 = vmatpush.bf16.msra.mxu0 0
      %1424 = vmatpush.bf16.msra.mxu0 0
      %1425 = vmatpush.bf16.msra.mxu0 0
      %1426 = vmatpush.bf16.msra.mxu0 0
      %1427 = vmatpush.bf16.msra.mxu0 0
      %1428 = vmatpush.bf16.msra.mxu0 0
      %1429 = vmatpush.bf16.msra.mxu0 %v1395
      %1430 = vmatpush.bf16.msra.mxu0 %v1394
      %1431 = vmatmul.bf16.gmra.mxu0 %v1400
      %v1432 = vpop.f32.mrf.mxu0
      %v1433 = vadd.f32 %v1384, %v1432
      %v1434 = vpop.f32.mrf.mxu0
      %v1435 = vadd.f32 %v1384, %v1434
      %1436 = vmatmul.bf16.gmra.mxu0 %v1403
      %v1437 = vpop.f32.mrf.mxu0
      %v1438 = vadd.f32 %v1384, %v1437
      %v1439 = vpop.f32.mrf.mxu0
      %v1440 = vadd.f32 %v1384, %v1439
      %1441 = vmatmul.bf16.gmra.mxu0 %v1406
      %v1442 = vpop.f32.mrf.mxu0
      %v1443 = vadd.f32 %v1384, %v1442
      %v1444 = vpop.f32.mrf.mxu0
      %v1445 = vadd.f32 %v1384, %v1444
      %1446 = vmatmul.bf16.gmra.mxu0 %v1409
      %v1447 = vpop.f32.mrf.mxu0
      %v1448 = vadd.f32 %v1384, %v1447
      %v1449 = vpop.f32.mrf.mxu0
      %v1450 = vadd.f32 %v1384, %v1449
      %1451 = vmatmul.bf16.gmra.mxu0 %v1412
      %v1452 = vpop.f32.mrf.mxu0
      %v1453 = vadd.f32 %v1384, %v1452
      %v1454 = vpop.f32.mrf.mxu0
      %v1455 = vadd.f32 %v1384, %v1454
      %1456 = vmatmul.bf16.gmra.mxu0 %v1415
      %v1457 = vpop.f32.mrf.mxu0
      %v1458 = vadd.f32 %v1384, %v1457
      %v1459 = vpop.f32.mrf.mxu0
      %v1460 = vadd.f32 %v1384, %v1459
      %1461 = vmatmul.bf16.gmra.mxu0 %v1418
      %v1462 = vpop.f32.mrf.mxu0
      %v1463 = vadd.f32 %v1384, %v1462
      %v1464 = vpop.f32.mrf.mxu0
      %v1465 = vadd.f32 %v1384, %v1464
      %1466 = vmatmul.bf16.gmra.mxu0 %v1421
      %v1467 = vpop.f32.mrf.mxu0
      %v1468 = vadd.f32 %v1384, %v1467
      %v1469 = vpop.f32.mrf.mxu0
      %v1470 = vadd.f32 %v1384, %v1469
      %1471 = vdwg.mxu0
      %vm1472 = vcmask 23552
      %1473 = vst.msk [vmem:[%s275] sm:$0xff] %vm1472, %v1433
      %1474 = vst.msk [vmem:[%s275 + $0x8] sm:$0xff] %vm1472, %v1435
      %1475 = vst.msk [vmem:[%s275 + $0x10] sm:$0xff] %vm1472, %v1438
      %1476 = vst.msk [vmem:[%s275 + $0x18] sm:$0xff] %vm1472, %v1440
      %1477 = vst.msk [vmem:[%s275 + $0x20] sm:$0xff] %vm1472, %v1443
      %1478 = vst.msk [vmem:[%s275 + $0x28] sm:$0xff] %vm1472, %v1445
      %1479 = vst.msk [vmem:[%s275 + $0x30] sm:$0xff] %vm1472, %v1448
      %1480 = vst.msk [vmem:[%s275 + $0x38] sm:$0xff] %vm1472, %v1450
      %1481 = vst.msk [vmem:[%s275 + $0x40] sm:$0xff] %vm1472, %v1453
      %1482 = vst.msk [vmem:[%s275 + $0x48] sm:$0xff] %vm1472, %v1455
      %1483 = vst.msk [vmem:[%s275 + $0x50] sm:$0xff] %vm1472, %v1458
      %1484 = vst.msk [vmem:[%s275 + $0x58] sm:$0xff] %vm1472, %v1460
      %1485 = vst.msk [vmem:[%s275 + $0x60] sm:$0xff] %vm1472, %v1463
      %1486 = vst.msk [vmem:[%s275 + $0x68] sm:$0xff] %vm1472, %v1465
      %1487 = vst.msk [vmem:[%s275 + $0x70] sm:$0xff] %vm1472, %v1468
      %1488 = vst.msk [vmem:[%s275 + $0x78] sm:$0xff] %vm1472, %v1470
      %s1489 = smul.u32 8, %s22
      %p1490 = scmp.lt.s32.totalorder %s21, 1
      %s1491 = scalar_select %p1490, %s21, 1
      %p1492 = scmp.lt.s32.totalorder %s1489, 15
      %s1493 = scalar_select %p1492, %s1489, 15
      %s1494 = smul.addr %s1493, 2
      %s1495 = smul.addr %s1491, 32
      %s1496 = sadd.s32 %s1494, %s1495
      %s1497 = smul.addr %s1496, 8
      %s1498 = scalar_lea.vmem %s6, %s1497
      // Predicated region
      $region49: #{ctnet_head_forward.1} parent=43 // pred_check
        %p1499 = pneg %p180
      $region50: #{ctnet_head_forward.1} parent=43 // pred_check_branch
        %1501 = sbr.rel (%p1499) target = $region52
      $region51: #{ctnet_head_forward.1} parent=43 // pred_region
        %s1502 = smul.u32 8, %s22
      $region52: #{ctnet_head_forward.1} parent=43 // pred_fallthru
        _
    $region44: #{ctnet_head_forward.1} parent=5 // pred_fallthru
      _
    %p1503 = scmp.le.s32.totalorder 2, %s12
    // Predicated region
    $region53: #{ctnet_head_forward.1} parent=5 // pred_check
      %p1504 = pneg %p1503
    $region54: #{ctnet_head_forward.1} parent=5 // pred_check_branch
      %1506 = sbr.rel (%p1504) target = $region56
    $region55: #{ctnet_head_forward.1} parent=5 // pred_region
      %s1507 = ssub.s32 %s12, 2
      // Predicated region
      $region57: #{ctnet_head_forward.1} parent=55 // pred_check
        %p1508 = pneg %p186
      $region58: #{ctnet_head_forward.1} parent=55 // pred_check_branch
        %1510 = sbr.rel (%p1508) target = $region60
      $region59: #{ctnet_head_forward.1} parent=55 // pred_region
        %s1511 = smul.u32 8, %s24
        %p1512 = scmp.lt.s32.totalorder %s23, 1
        %s1513 = scalar_select %p1512, %s23, 1
        %p1514 = scmp.lt.s32.totalorder %s1511, 15
        %s1515 = scalar_select %p1514, %s1511, 15
        %s1516 = smul.addr %s1515, 2
        %s1517 = smul.addr %s1513, 32
        %s1518 = sadd.s32 %s1516, %s1517
        %s1519 = smul.addr %s1518, 8
        %s1520 = scalar_lea.vmem %s6, %s1519
      $region60: #{ctnet_head_forward.1} parent=55 // pred_fallthru
        _
    $region56: #{ctnet_head_forward.1} parent=5 // pred_fallthru
      _
  $region6: #{ctnet_head_forward.1} parent=0 // loop_footer
    %s16 = sadd.s32 1, %s12
  $region7: #{ctnet_head_forward.1} parent=0 // loop_footer_branch
    %11 = sbr.rel target = $region3
  $region8: #{ctnet_head_forward.1} parent=0 // loop_exit
    _

</llo_original>
